<compile_context>
chip_gen: v7x
topology: tpu7x:2x2x1
jax: 0.10.0
libtpu: 0.0.40
codegen_flags: <defaults>
</compile_context>

<pallas_src>
import functools

import jax
import jax.numpy as jnp
from jax.experimental import pallas as pl
from jax.experimental.pallas import tpu as pltpu

KERNEL1 = 5                    # first conv kernel size (module default kernel=5)
KERNEL2 = 3                    # second conv kernel size (hard-coded in the module)
PAD = (KERNEL1 - 1) // 2 + 1   # ReplicationPad1d pad_l = pad_r = 3
LEAKY_SLOPE = 0.01
LANE = 128
SUBLANE = 8


def _round_up(v, m):
    return (v + m - 1) // m * m


# ---------------------------------------------------------------------------
# Kernel
# ---------------------------------------------------------------------------
def _conv_block_pair(slab, w1, b1, w2, b2, *, lh, bt):
    """Fused (block-diagonal) pair of SCINet conv blocks on a lane-dense slab.

    slab : (2*Cp, lh*bt) f32; lanes are time-major / batch-minor (bt % 128 == 0),
           rows [0,Cp) = first block's input channels, [Cp,2Cp) = second block's.
    Returns (2*Cp, lh*bt) = tanh(conv2(leaky_relu(conv1(rep_pad(slab))))).
    Every tap slice below starts at k*bt -> contiguous, 128-aligned lane slice.
    """
    f32 = jnp.float32
    l1 = lh + 2 * PAD - (KERNEL1 - 1)          # conv-1 output length (= lh + 2)

    # ReplicationPad1d((PAD, PAD)): replicate the t=0 / t=lh-1 batch blocks.
    first = slab[:, :bt]
    last = slab[:, (lh - 1) * bt:]
    xpad = jnp.concatenate([first] * PAD + [slab] + [last] * PAD, axis=1)

    # conv-1 (kernel 5, valid) as one dot over K1 aligned tap slices.
    xcol = jnp.concatenate(
        [xpad[:, k * bt:(k + l1) * bt] for k in range(KERNEL1)], axis=0)
    h = jnp.dot(w1, xcol, preferred_element_type=f32) + b1
    h = jnp.where(h > 0, h, LEAKY_SLOPE * h)   # LeakyReLU(0.01)
    # TODO(synk): nn.Dropout is identity here (eval mode); training-mode RNG dropout
    # is not implemented.

    # conv-2 (kernel 3, valid) as one dot over K2 aligned tap slices.
    hcol = jnp.concatenate(
        [h[:, k * bt:(k + lh) * bt] for k in range(KERNEL2)], axis=0)
    return jnp.tanh(jnp.dot(w2, hcol, preferred_element_type=f32) + b2)


def _interactor_kernel(xin_ref, w1_ref, b1_ref, w2_ref, b2_ref, out_ref, *,
                       lh, bt, c_pad):
    """One grid step = `bt` batch lanes (bt % 128 == 0).

    xin_ref : (lh, 2*c_pad, bt)   sublanes = [even chans | odd chans], lanes = batch
    w1_ref  : (2, 2*ch_pad, K1*2*c_pad)  fused block-diag conv-1 weights
              (stage 0 = phi/psi, stage 1 = U/P)
    b1_ref  : (2, 2*ch_pad, 1)
    w2_ref  : (2, 2*c_pad, K2*2*ch_pad)  fused block-diag conv-2 weights
    b2_ref  : (2, 2*c_pad, 1)
    out_ref : (lh, 2*c_pad, bt)   sublanes = [even update | odd update]
    """
    f32 = jnp.float32

    # Assemble the lane-dense compute slab (2*c_pad, lh*bt): lh aligned lane-block
    # copies -- no transposes, no per-sample loops.
    slab = jnp.concatenate([xin_ref[t].astype(f32) for t in range(lh)], axis=1)

    # ---- INN=True path of Interactor.forward ----
    y0 = _conv_block_pair(slab, w1_ref[0], b1_ref[0], w2_ref[0], b2_ref[0],
                          lh=lh, bt=bt)                  # [phi(x_even); psi(x_odd)]
    xe, xo = slab[:c_pad], slab[c_pad:]
    d = xo * jnp.exp(y0[:c_pad])                         # x_odd  * exp(phi(x_even))
    c = xe * jnp.exp(y0[c_pad:])                         # x_even * exp(psi(x_odd))

    y1 = _conv_block_pair(jnp.concatenate([d, c], axis=0),
                          w1_ref[1], b1_ref[1], w2_ref[1], b2_ref[1],
                          lh=lh, bt=bt)                  # [U(d); P(c)]
    even = c + y1[:c_pad]
    odd = d - y1[c_pad:]

    out = jnp.concatenate([even, odd], axis=0).astype(out_ref.dtype)
    for t in range(lh):                                  # full-lane (bt-wide) stores
        out_ref[t] = out[:, t * bt:(t + 1) * bt]


# ---------------------------------------------------------------------------
# Wrapper
# ---------------------------------------------------------------------------
def _choose_batch_tile(b_pad, lh, row_bytes, vmem_budget_bytes=8 << 20,
                       target_lanes=2048):
    """Pick bt = batch lanes per grid step (multiple of 128 dividing b_pad).

    Aim for >= target_lanes lanes per step (amortize the ~0.35us/step overhead),
    cap the per-step f32 working set by `vmem_budget_bytes` (safe under v7x's
    64 MiB VMEM / 32 MiB scoped default), and keep the grid >= 2 when the batch
    allows it so the "parallel" axis can shard across v7x's two TensorCores."""
    n = b_pad // LANE
    divisors = [u for u in range(1, n + 1) if n % u == 0]
    fits = [u for u in divisors
            if lh * u * LANE * row_bytes <= vmem_budget_bytes] or divisors[:1]
    bt_units = fits[-1]                        # largest tile within the budget
    for u in fits:                             # smallest tile that is lane-dense enough
        if lh * u * LANE >= target_lanes:
            bt_units = u
            break
    if n // bt_units < 2:                      # prefer >= 2 grid steps (v7x megacore)
        two_step = [u for u in fits if n // u >= 2]
        if two_step:
            bt_units = two_step[-1]
    return bt_units * LANE


def interactor_forward(x, packed_params):
    """x: (B, T, C) float32. Returns (x_even_update, x_odd_update), each (B, T//2, C)."""
    B, T, C = x.shape
    assert T % 2 == 0
    Lh = T // 2

    w1s, b1s, w2s, b2s = packed_params
    c_pad = w2s.shape[1] // 2
    ch_pad = w1s.shape[1] // 2
    assert c_pad >= C and w1s.shape[2] == KERNEL1 * 2 * c_pad

    B_pad = _round_up(max(B, 1), LANE)
    # rough f32 working-set bytes per lane of the per-step slab
    row_bytes = 4 * (2 * c_pad * (KERNEL1 + 8) + 2 * ch_pad * (KERNEL2 + 3))
    bt = _choose_batch_tile(B_pad, Lh, row_bytes)
    grid = (B_pad // bt,)

    # Single fused layout pass in XLA: even/odd de-interleave + transpose to the
    # kernel's lane-dense layout (time, [even|odd] channels padded to 8, batch -> 128).
    xr = x.reshape(B, Lh, 2, C)                          # [...,0,:]=even, [...,1,:]=odd
    xin = jnp.transpose(xr, (1, 2, 3, 0))                # (Lh, 2, C, B)
    xin = jnp.pad(xin, ((0, 0), (0, 0), (0, c_pad - C), (0, B_pad - B)))
    xin = xin.reshape(Lh, 2 * c_pad, B_pad)

    kern = functools.partial(_interactor_kernel, lh=Lh, bt=bt, c_pad=c_pad)

    out = pl.pallas_call(
        kern,
        out_shape=jax.ShapeDtypeStruct((Lh, 2 * c_pad, B_pad), x.dtype),
        grid_spec=pltpu.PrefetchScalarGridSpec(
            num_scalar_prefetch=0,
            grid=grid,
            in_specs=[
                pl.BlockSpec((Lh, 2 * c_pad, bt), lambda i: (0, 0, i)),   # x slab
                pl.BlockSpec(w1s.shape, lambda i: (0, 0, 0)),             # conv-1 W
                pl.BlockSpec(b1s.shape, lambda i: (0, 0, 0)),             # conv-1 b
                pl.BlockSpec(w2s.shape, lambda i: (0, 0, 0)),             # conv-2 W
                pl.BlockSpec(b2s.shape, lambda i: (0, 0, 0)),             # conv-2 b
            ],
            out_specs=pl.BlockSpec((Lh, 2 * c_pad, bt), lambda i: (0, 0, i)),
        ),
        compiler_params=pltpu.CompilerParams(
            dimension_semantics=("parallel",),
            vmem_limit_bytes=32 * 1024 * 1024,   # per-step working set stays far below
        ),
    )(xin, w1s, b1s, w2s, b2s)

    # Back to the module's (B, T//2, C) contract; slicing drops the zero padding.
    out = jnp.transpose(out, (2, 0, 1))                  # (B_pad, Lh, 2*c_pad)
    even = out[:B, :, :C]
    odd = out[:B, :, c_pad:c_pad + C]
    return even, odd


# ---------------------------------------------------------------------------
# Parameter init + fused (zero-padded, block-diagonal) packing
# (raw shapes follow Interactor.__init__ with in_planes=C, kernel=5, hidden_size, groups=1)
# ---------------------------------------------------------------------------
def _pad_conv(w, b, o_pad, i_pad):
    o, i, _ = w.shape
    return (jnp.pad(w, ((0, o_pad - o), (0, i_pad - i), (0, 0))),
            jnp.pad(b, ((0, o_pad - o),)))


def _pair_block_diag(wa, wb):
    """Two (O, I, K) conv weights -> (2O, K*2I): tap-major columns, block-diag per tap."""
    o, i, k = wa.shape
    z = jnp.zeros((o, i), wa.dtype)
    taps = []
    for t in range(k):
        top = jnp.concatenate([wa[:, :, t], z], axis=1)
        bot = jnp.concatenate([z, wb[:, :, t]], axis=1)
        taps.append(jnp.concatenate([top, bot], axis=0))
    return jnp.concatenate(taps, axis=1)


def pack_params(phi, psi, P, U):
    """Fuse (phi,psi) and (U,P) into zero-padded block-diagonal im2col weights.

    Assumes groups=1 (the module default); grouped convs would need per-group packing.
    """
    c_hid, in_planes, _ = phi[0].shape
    c_pad = _round_up(in_planes, SUBLANE)
    ch_pad = _round_up(c_hid, SUBLANE)

    def stage(a, b):
        w1a, b1a, w2a, b2a = a
        w1b, b1b, w2b, b2b = b
        w1a, b1a = _pad_conv(w1a, b1a, ch_pad, c_pad)
        w1b, b1b = _pad_conv(w1b, b1b, ch_pad, c_pad)
        w2a, b2a = _pad_conv(w2a, b2a, c_pad, ch_pad)
        w2b, b2b = _pad_conv(w2b, b2b, c_pad, ch_pad)
        return (_pair_block_diag(w1a, w1b),
                jnp.concatenate([b1a, b1b])[:, None],
                _pair_block_diag(w2a, w2b),
                jnp.concatenate([b2a, b2b])[:, None])

    s0 = stage(phi, psi)   # applied to [x_even ; x_odd] channels
    s1 = stage(U, P)       # applied to [d ; c] channels
    return (jnp.stack([s0[0], s1[0]]), jnp.stack([s0[1], s1[1]]),
            jnp.stack([s0[2], s1[2]]), jnp.stack([s0[3], s1[3]]))


def init_params(key, in_planes, hidden_size=1):
    c_hid = int(in_planes * hidden_size)
    raw = []
    for bk in jax.random.split(key, 4):        # phi, psi, P, U
        k1, k2, k3, k4 = jax.random.split(bk, 4)
        raw.append((jax.random.normal(k1, (c_hid, in_planes, KERNEL1), jnp.float32) * 0.2,
                    jax.random.normal(k2, (c_hid,), jnp.float32) * 0.1,
                    jax.random.normal(k3, (in_planes, c_hid, KERNEL2), jnp.float32) * 0.2,
                    jax.random.normal(k4, (in_planes,), jnp.float32) * 0.1))
    phi, psi, P, U = raw
    return pack_params(phi, psi, P, U), raw


# ---------------------------------------------------------------------------
# Pure-JAX reference (lax.conv) for verification.
# ---------------------------------------------------------------------------
def _conv_block_ref(x, w1, b1, w2, b2):
    xp = jnp.pad(x, ((0, 0), (0, 0), (PAD, PAD)), mode="edge")
    y = jax.lax.conv_general_dilated(xp, w1, (1,), "VALID",
                                     dimension_numbers=("NCH", "OIH", "NCH"))
    y = y + b1[None, :, None]
    y = jnp.where(y > 0, y, LEAKY_SLOPE * y)
    y = jax.lax.conv_general_dilated(y, w2, (1,), "VALID",
                                     dimension_numbers=("NCH", "OIH", "NCH"))
    y = y + b2[None, :, None]
    return jnp.tanh(y)


def interactor_ref(x, raw_blocks):
    x_even = jnp.transpose(x[:, ::2, :], (0, 2, 1))
    x_odd = jnp.transpose(x[:, 1::2, :], (0, 2, 1))
    phi, psi, P, U = raw_blocks
    d = x_odd * jnp.exp(_conv_block_ref(x_even, *phi))
    c = x_even * jnp.exp(_conv_block_ref(x_odd, *psi))
    even_u = c + _conv_block_ref(d, *U)
    odd_u = d - _conv_block_ref(c, *P)
    return jnp.transpose(even_u, (0, 2, 1)), jnp.transpose(odd_u, (0, 2, 1))


if __name__ == "__main__":
    B, T, C = 2, 16, 4   # in_planes = 4, seq length 16 -> halves of length 8

    key = jax.random.PRNGKey(0)
    k_x, k_p = jax.random.split(key)
    x = jax.random.normal(k_x, (B, T, C), jnp.float32)
    packed_params, raw_blocks = init_params(k_p, in_planes=C, hidden_size=1)

    even_u, odd_u = jax.jit(interactor_forward)(x, packed_params)
    even_u = jax.block_until_ready(even_u)
    odd_u = jax.block_until_ready(odd_u)

    even_ref, odd_ref = interactor_ref(x, raw_blocks)
    assert even_u.shape == (B, T // 2, C) and odd_u.shape == (B, T // 2, C)
    assert jnp.allclose(even_u, even_ref, atol=2e-3, rtol=2e-3), (
        "even mismatch, max abs diff = %g" % float(jnp.max(jnp.abs(even_u - even_ref))))
    assert jnp.allclose(odd_u, odd_ref, atol=2e-3, rtol=2e-3), (
        "odd mismatch, max abs diff = %g" % float(jnp.max(jnp.abs(odd_u - odd_ref))))

    print("KERNEL_OK")
</pallas_src>

<mosaic_0001>
module attributes {stable_mosaic.version = 11 : i64} {
  func.func @_interactor_kernel(%arg0: i32, %arg1: memref<8x16x128xf32, #tpu.memory_space<vmem>>, %arg2: memref<2x16x80xf32, #tpu.memory_space<vmem>>, %arg3: memref<2x16x1xf32, #tpu.memory_space<vmem>>, %arg4: memref<2x16x48xf32, #tpu.memory_space<vmem>>, %arg5: memref<2x16x1xf32, #tpu.memory_space<vmem>>, %arg6: memref<8x16x128xf32, #tpu.memory_space<vmem>>) attributes {dimension_semantics = [#tpu.dimension_semantics<parallel>], iteration_bounds = array<i64: 1>, scalar_prefetch = 0 : i64, scratch_operands = 0 : i64, tpu.core_type = #tpu.core_type<tc>, window_params = [{transform_indices = @transform_0, window_bounds = array<i64: 8, 16, 128>}, {pipeline_mode = #tpu.pipeline_mode<synchronous>, transform_indices = @transform_1, window_bounds = array<i64: 2, 16, 80>}, {pipeline_mode = #tpu.pipeline_mode<synchronous>, transform_indices = @transform_2, window_bounds = array<i64: 2, 16, 1>}, {pipeline_mode = #tpu.pipeline_mode<synchronous>, transform_indices = @transform_3, window_bounds = array<i64: 2, 16, 48>}, {pipeline_mode = #tpu.pipeline_mode<synchronous>, transform_indices = @transform_4, window_bounds = array<i64: 2, 16, 1>}, {transform_indices = @transform_5, window_bounds = array<i64: 8, 16, 128>}]} {
    %c0 = arith.constant 0 : index
    %c0_0 = arith.constant 0 : index
    %c0_1 = arith.constant 0 : index
    %0 = vector.load %arg1[%c0, %c0_0, %c0_1] : memref<8x16x128xf32, #tpu.memory_space<vmem>>, vector<1x16x128xf32>
    %1 = vector.shape_cast %0 : vector<1x16x128xf32> to vector<16x128xf32>
    %c1 = arith.constant 1 : index
    %c0_2 = arith.constant 0 : index
    %c0_3 = arith.constant 0 : index
    %2 = vector.load %arg1[%c1, %c0_2, %c0_3] : memref<8x16x128xf32, #tpu.memory_space<vmem>>, vector<1x16x128xf32>
    %3 = vector.shape_cast %2 : vector<1x16x128xf32> to vector<16x128xf32>
    %c2 = arith.constant 2 : index
    %c0_4 = arith.constant 0 : index
    %c0_5 = arith.constant 0 : index
    %4 = vector.load %arg1[%c2, %c0_4, %c0_5] : memref<8x16x128xf32, #tpu.memory_space<vmem>>, vector<1x16x128xf32>
    %5 = vector.shape_cast %4 : vector<1x16x128xf32> to vector<16x128xf32>
    %c3 = arith.constant 3 : index
    %c0_6 = arith.constant 0 : index
    %c0_7 = arith.constant 0 : index
    %6 = vector.load %arg1[%c3, %c0_6, %c0_7] : memref<8x16x128xf32, #tpu.memory_space<vmem>>, vector<1x16x128xf32>
    %7 = vector.shape_cast %6 : vector<1x16x128xf32> to vector<16x128xf32>
    %c4 = arith.constant 4 : index
    %c0_8 = arith.constant 0 : index
    %c0_9 = arith.constant 0 : index
    %8 = vector.load %arg1[%c4, %c0_8, %c0_9] : memref<8x16x128xf32, #tpu.memory_space<vmem>>, vector<1x16x128xf32>
    %9 = vector.shape_cast %8 : vector<1x16x128xf32> to vector<16x128xf32>
    %c5 = arith.constant 5 : index
    %c0_10 = arith.constant 0 : index
    %c0_11 = arith.constant 0 : index
    %10 = vector.load %arg1[%c5, %c0_10, %c0_11] : memref<8x16x128xf32, #tpu.memory_space<vmem>>, vector<1x16x128xf32>
    %11 = vector.shape_cast %10 : vector<1x16x128xf32> to vector<16x128xf32>
    %c6 = arith.constant 6 : index
    %c0_12 = arith.constant 0 : index
    %c0_13 = arith.constant 0 : index
    %12 = vector.load %arg1[%c6, %c0_12, %c0_13] : memref<8x16x128xf32, #tpu.memory_space<vmem>>, vector<1x16x128xf32>
    %13 = vector.shape_cast %12 : vector<1x16x128xf32> to vector<16x128xf32>
    %c7 = arith.constant 7 : index
    %c0_14 = arith.constant 0 : index
    %c0_15 = arith.constant 0 : index
    %14 = vector.load %arg1[%c7, %c0_14, %c0_15] : memref<8x16x128xf32, #tpu.memory_space<vmem>>, vector<1x16x128xf32>
    %15 = vector.shape_cast %14 : vector<1x16x128xf32> to vector<16x128xf32>
    %16 = tpu.concatenate %1, %3, %5, %7, %9, %11, %13, %15 in 1 : vector<16x128xf32>, vector<16x128xf32>, vector<16x128xf32>, vector<16x128xf32>, vector<16x128xf32>, vector<16x128xf32>, vector<16x128xf32>, vector<16x128xf32> -> vector<16x1024xf32>
    %c0_16 = arith.constant 0 : index
    %c0_17 = arith.constant 0 : index
    %c0_18 = arith.constant 0 : index
    %17 = vector.load %arg2[%c0_16, %c0_17, %c0_18] : memref<2x16x80xf32, #tpu.memory_space<vmem>>, vector<1x16x80xf32>
    %18 = vector.shape_cast %17 : vector<1x16x80xf32> to vector<16x80xf32>
    %c0_19 = arith.constant 0 : index
    %c0_20 = arith.constant 0 : index
    %c0_21 = arith.constant 0 : index
    %19 = vector.load %arg3[%c0_19, %c0_20, %c0_21] : memref<2x16x1xf32, #tpu.memory_space<vmem>>, vector<1x16x1xf32>
    %20 = vector.shape_cast %19 : vector<1x16x1xf32> to vector<16x1xf32>
    %c0_22 = arith.constant 0 : index
    %c0_23 = arith.constant 0 : index
    %c0_24 = arith.constant 0 : index
    %21 = vector.load %arg4[%c0_22, %c0_23, %c0_24] : memref<2x16x48xf32, #tpu.memory_space<vmem>>, vector<1x16x48xf32>
    %22 = vector.shape_cast %21 : vector<1x16x48xf32> to vector<16x48xf32>
    %c0_25 = arith.constant 0 : index
    %c0_26 = arith.constant 0 : index
    %c0_27 = arith.constant 0 : index
    %23 = vector.load %arg5[%c0_25, %c0_26, %c0_27] : memref<2x16x1xf32, #tpu.memory_space<vmem>>, vector<1x16x1xf32>
    %24 = vector.shape_cast %23 : vector<1x16x1xf32> to vector<16x1xf32>
    %25 = vector.extract_strided_slice %16 {offsets = [0, 0], sizes = [16, 128], strides = [1, 1]} : vector<16x1024xf32> to vector<16x128xf32>
    %26 = vector.extract_strided_slice %16 {offsets = [0, 896], sizes = [16, 128], strides = [1, 1]} : vector<16x1024xf32> to vector<16x128xf32>
    %27 = tpu.concatenate %25, %25, %25, %16, %26, %26, %26 in 1 : vector<16x128xf32>, vector<16x128xf32>, vector<16x128xf32>, vector<16x1024xf32>, vector<16x128xf32>, vector<16x128xf32>, vector<16x128xf32> -> vector<16x1792xf32>
    %28 = vector.extract_strided_slice %27 {offsets = [0, 0], sizes = [16, 1280], strides = [1, 1]} : vector<16x1792xf32> to vector<16x1280xf32>
    %29 = vector.extract_strided_slice %27 {offsets = [0, 128], sizes = [16, 1280], strides = [1, 1]} : vector<16x1792xf32> to vector<16x1280xf32>
    %30 = vector.extract_strided_slice %27 {offsets = [0, 256], sizes = [16, 1280], strides = [1, 1]} : vector<16x1792xf32> to vector<16x1280xf32>
    %31 = vector.extract_strided_slice %27 {offsets = [0, 384], sizes = [16, 1280], strides = [1, 1]} : vector<16x1792xf32> to vector<16x1280xf32>
    %32 = vector.extract_strided_slice %27 {offsets = [0, 512], sizes = [16, 1280], strides = [1, 1]} : vector<16x1792xf32> to vector<16x1280xf32>
    %33 = tpu.concatenate %28, %29, %30, %31, %32 in 0 : vector<16x1280xf32>, vector<16x1280xf32>, vector<16x1280xf32>, vector<16x1280xf32>, vector<16x1280xf32> -> vector<80x1280xf32>
    %cst = arith.constant dense<0.000000e+00> : vector<16x1280xf32>
    %34 = tpu.matmul %18, %33, %cst {dimension_numbers = #tpu.dot_dimension_numbers<[1], [0], [0], [1], [0, 0, 1, 1], [], []>} : vector<16x80xf32>, vector<80x1280xf32>, vector<16x1280xf32> -> vector<16x1280xf32>
    %35 = vector.broadcast %20 : vector<16x1xf32> to vector<16x1280xf32>
    %36 = arith.addf %34, %35 : vector<16x1280xf32>
    %cst_28 = arith.constant 0.000000e+00 : f32
    %37 = vector.broadcast %cst_28 : f32 to vector<16x1280xf32>
    %38 = arith.cmpf ogt, %36, %37 : vector<16x1280xf32>
    %cst_29 = arith.constant 0.00999999977 : f32
    %39 = vector.broadcast %cst_29 : f32 to vector<16x1280xf32>
    %40 = arith.mulf %39, %36 : vector<16x1280xf32>
    %41 = arith.select %38, %36, %40 : vector<16x1280xi1>, vector<16x1280xf32>
    %42 = vector.extract_strided_slice %41 {offsets = [0, 0], sizes = [16, 1024], strides = [1, 1]} : vector<16x1280xf32> to vector<16x1024xf32>
    %43 = vector.extract_strided_slice %41 {offsets = [0, 128], sizes = [16, 1024], strides = [1, 1]} : vector<16x1280xf32> to vector<16x1024xf32>
    %44 = vector.extract_strided_slice %41 {offsets = [0, 256], sizes = [16, 1024], strides = [1, 1]} : vector<16x1280xf32> to vector<16x1024xf32>
    %45 = tpu.concatenate %42, %43, %44 in 0 : vector<16x1024xf32>, vector<16x1024xf32>, vector<16x1024xf32> -> vector<48x1024xf32>
    %cst_30 = arith.constant dense<0.000000e+00> : vector<16x1024xf32>
    %46 = tpu.matmul %22, %45, %cst_30 {dimension_numbers = #tpu.dot_dimension_numbers<[1], [0], [0], [1], [0, 0, 1, 1], [], []>} : vector<16x48xf32>, vector<48x1024xf32>, vector<16x1024xf32> -> vector<16x1024xf32>
    %47 = vector.broadcast %24 : vector<16x1xf32> to vector<16x1024xf32>
    %48 = arith.addf %46, %47 : vector<16x1024xf32>
    %49 = math.tanh %48 : vector<16x1024xf32>
    %50 = vector.extract_strided_slice %16 {offsets = [0, 0], sizes = [8, 1024], strides = [1, 1]} : vector<16x1024xf32> to vector<8x1024xf32>
    %51 = vector.extract_strided_slice %16 {offsets = [8, 0], sizes = [8, 1024], strides = [1, 1]} : vector<16x1024xf32> to vector<8x1024xf32>
    %52 = vector.extract_strided_slice %49 {offsets = [0, 0], sizes = [8, 1024], strides = [1, 1]} : vector<16x1024xf32> to vector<8x1024xf32>
    %53 = math.exp %52 : vector<8x1024xf32>
    %54 = arith.mulf %51, %53 : vector<8x1024xf32>
    %55 = vector.extract_strided_slice %49 {offsets = [8, 0], sizes = [8, 1024], strides = [1, 1]} : vector<16x1024xf32> to vector<8x1024xf32>
    %56 = math.exp %55 : vector<8x1024xf32>
    %57 = arith.mulf %50, %56 : vector<8x1024xf32>
    %58 = tpu.concatenate %54, %57 in 0 : vector<8x1024xf32>, vector<8x1024xf32> -> vector<16x1024xf32>
    %c1_31 = arith.constant 1 : index
    %c0_32 = arith.constant 0 : index
    %c0_33 = arith.constant 0 : index
    %59 = vector.load %arg2[%c1_31, %c0_32, %c0_33] : memref<2x16x80xf32, #tpu.memory_space<vmem>>, vector<1x16x80xf32>
    %60 = vector.shape_cast %59 : vector<1x16x80xf32> to vector<16x80xf32>
    %c1_34 = arith.constant 1 : index
    %c0_35 = arith.constant 0 : index
    %c0_36 = arith.constant 0 : index
    %61 = vector.load %arg3[%c1_34, %c0_35, %c0_36] : memref<2x16x1xf32, #tpu.memory_space<vmem>>, vector<1x16x1xf32>
    %62 = vector.shape_cast %61 : vector<1x16x1xf32> to vector<16x1xf32>
    %c1_37 = arith.constant 1 : index
    %c0_38 = arith.constant 0 : index
    %c0_39 = arith.constant 0 : index
    %63 = vector.load %arg4[%c1_37, %c0_38, %c0_39] : memref<2x16x48xf32, #tpu.memory_space<vmem>>, vector<1x16x48xf32>
    %64 = vector.shape_cast %63 : vector<1x16x48xf32> to vector<16x48xf32>
    %c1_40 = arith.constant 1 : index
    %c0_41 = arith.constant 0 : index
    %c0_42 = arith.constant 0 : index
    %65 = vector.load %arg5[%c1_40, %c0_41, %c0_42] : memref<2x16x1xf32, #tpu.memory_space<vmem>>, vector<1x16x1xf32>
    %66 = vector.shape_cast %65 : vector<1x16x1xf32> to vector<16x1xf32>
    %67 = vector.extract_strided_slice %58 {offsets = [0, 0], sizes = [16, 128], strides = [1, 1]} : vector<16x1024xf32> to vector<16x128xf32>
    %68 = vector.extract_strided_slice %58 {offsets = [0, 896], sizes = [16, 128], strides = [1, 1]} : vector<16x1024xf32> to vector<16x128xf32>
    %69 = tpu.concatenate %67, %67, %67, %58, %68, %68, %68 in 1 : vector<16x128xf32>, vector<16x128xf32>, vector<16x128xf32>, vector<16x1024xf32>, vector<16x128xf32>, vector<16x128xf32>, vector<16x128xf32> -> vector<16x1792xf32>
    %70 = vector.extract_strided_slice %69 {offsets = [0, 0], sizes = [16, 1280], strides = [1, 1]} : vector<16x1792xf32> to vector<16x1280xf32>
    %71 = vector.extract_strided_slice %69 {offsets = [0, 128], sizes = [16, 1280], strides = [1, 1]} : vector<16x1792xf32> to vector<16x1280xf32>
    %72 = vector.extract_strided_slice %69 {offsets = [0, 256], sizes = [16, 1280], strides = [1, 1]} : vector<16x1792xf32> to vector<16x1280xf32>
    %73 = vector.extract_strided_slice %69 {offsets = [0, 384], sizes = [16, 1280], strides = [1, 1]} : vector<16x1792xf32> to vector<16x1280xf32>
    %74 = vector.extract_strided_slice %69 {offsets = [0, 512], sizes = [16, 1280], strides = [1, 1]} : vector<16x1792xf32> to vector<16x1280xf32>
    %75 = tpu.concatenate %70, %71, %72, %73, %74 in 0 : vector<16x1280xf32>, vector<16x1280xf32>, vector<16x1280xf32>, vector<16x1280xf32>, vector<16x1280xf32> -> vector<80x1280xf32>
    %cst_43 = arith.constant dense<0.000000e+00> : vector<16x1280xf32>
    %76 = tpu.matmul %60, %75, %cst_43 {dimension_numbers = #tpu.dot_dimension_numbers<[1], [0], [0], [1], [0, 0, 1, 1], [], []>} : vector<16x80xf32>, vector<80x1280xf32>, vector<16x1280xf32> -> vector<16x1280xf32>
    %77 = vector.broadcast %62 : vector<16x1xf32> to vector<16x1280xf32>
    %78 = arith.addf %76, %77 : vector<16x1280xf32>
    %cst_44 = arith.constant 0.000000e+00 : f32
    %79 = vector.broadcast %cst_44 : f32 to vector<16x1280xf32>
    %80 = arith.cmpf ogt, %78, %79 : vector<16x1280xf32>
    %cst_45 = arith.constant 0.00999999977 : f32
    %81 = vector.broadcast %cst_45 : f32 to vector<16x1280xf32>
    %82 = arith.mulf %81, %78 : vector<16x1280xf32>
    %83 = arith.select %80, %78, %82 : vector<16x1280xi1>, vector<16x1280xf32>
    %84 = vector.extract_strided_slice %83 {offsets = [0, 0], sizes = [16, 1024], strides = [1, 1]} : vector<16x1280xf32> to vector<16x1024xf32>
    %85 = vector.extract_strided_slice %83 {offsets = [0, 128], sizes = [16, 1024], strides = [1, 1]} : vector<16x1280xf32> to vector<16x1024xf32>
    %86 = vector.extract_strided_slice %83 {offsets = [0, 256], sizes = [16, 1024], strides = [1, 1]} : vector<16x1280xf32> to vector<16x1024xf32>
    %87 = tpu.concatenate %84, %85, %86 in 0 : vector<16x1024xf32>, vector<16x1024xf32>, vector<16x1024xf32> -> vector<48x1024xf32>
    %cst_46 = arith.constant dense<0.000000e+00> : vector<16x1024xf32>
    %88 = tpu.matmul %64, %87, %cst_46 {dimension_numbers = #tpu.dot_dimension_numbers<[1], [0], [0], [1], [0, 0, 1, 1], [], []>} : vector<16x48xf32>, vector<48x1024xf32>, vector<16x1024xf32> -> vector<16x1024xf32>
    %89 = vector.broadcast %66 : vector<16x1xf32> to vector<16x1024xf32>
    %90 = arith.addf %88, %89 : vector<16x1024xf32>
    %91 = math.tanh %90 : vector<16x1024xf32>
    %92 = vector.extract_strided_slice %91 {offsets = [0, 0], sizes = [8, 1024], strides = [1, 1]} : vector<16x1024xf32> to vector<8x1024xf32>
    %93 = arith.addf %57, %92 : vector<8x1024xf32>
    %94 = vector.extract_strided_slice %91 {offsets = [8, 0], sizes = [8, 1024], strides = [1, 1]} : vector<16x1024xf32> to vector<8x1024xf32>
    %95 = arith.subf %54, %94 : vector<8x1024xf32>
    %96 = tpu.concatenate %93, %95 in 0 : vector<8x1024xf32>, vector<8x1024xf32> -> vector<16x1024xf32>
    %97 = vector.extract_strided_slice %96 {offsets = [0, 0], sizes = [16, 128], strides = [1, 1]} : vector<16x1024xf32> to vector<16x128xf32>
    %c0_47 = arith.constant 0 : index
    %c0_48 = arith.constant 0 : index
    %c0_49 = arith.constant 0 : index
    %98 = vector.load %arg6[%c0_47, %c0_48, %c0_49] : memref<8x16x128xf32, #tpu.memory_space<vmem>>, vector<1x16x128xf32>
    %99 = vector.shape_cast %98 : vector<1x16x128xf32> to vector<16x128xf32>
    %100 = vector.shape_cast %97 : vector<16x128xf32> to vector<1x16x128xf32>
    tpu.vector_store %arg6[%c0_47, %c0_48, %c0_49], %100 {strides = array<i32>} : memref<8x16x128xf32, #tpu.memory_space<vmem>>, vector<1x16x128xf32>,
    %101 = vector.extract_strided_slice %96 {offsets = [0, 128], sizes = [16, 128], strides = [1, 1]} : vector<16x1024xf32> to vector<16x128xf32>
    %c1_50 = arith.constant 1 : index
    %c0_51 = arith.constant 0 : index
    %c0_52 = arith.constant 0 : index
    %102 = vector.load %arg6[%c1_50, %c0_51, %c0_52] : memref<8x16x128xf32, #tpu.memory_space<vmem>>, vector<1x16x128xf32>
    %103 = vector.shape_cast %102 : vector<1x16x128xf32> to vector<16x128xf32>
    %104 = vector.shape_cast %101 : vector<16x128xf32> to vector<1x16x128xf32>
    tpu.vector_store %arg6[%c1_50, %c0_51, %c0_52], %104 {strides = array<i32>} : memref<8x16x128xf32, #tpu.memory_space<vmem>>, vector<1x16x128xf32>,
    %105 = vector.extract_strided_slice %96 {offsets = [0, 256], sizes = [16, 128], strides = [1, 1]} : vector<16x1024xf32> to vector<16x128xf32>
    %c2_53 = arith.constant 2 : index
    %c0_54 = arith.constant 0 : index
    %c0_55 = arith.constant 0 : index
    %106 = vector.load %arg6[%c2_53, %c0_54, %c0_55] : memref<8x16x128xf32, #tpu.memory_space<vmem>>, vector<1x16x128xf32>
    %107 = vector.shape_cast %106 : vector<1x16x128xf32> to vector<16x128xf32>
    %108 = vector.shape_cast %105 : vector<16x128xf32> to vector<1x16x128xf32>
    tpu.vector_store %arg6[%c2_53, %c0_54, %c0_55], %108 {strides = array<i32>} : memref<8x16x128xf32, #tpu.memory_space<vmem>>, vector<1x16x128xf32>,
    %109 = vector.extract_strided_slice %96 {offsets = [0, 384], sizes = [16, 128], strides = [1, 1]} : vector<16x1024xf32> to vector<16x128xf32>
    %c3_56 = arith.constant 3 : index
    %c0_57 = arith.constant 0 : index
    %c0_58 = arith.constant 0 : index
    %110 = vector.load %arg6[%c3_56, %c0_57, %c0_58] : memref<8x16x128xf32, #tpu.memory_space<vmem>>, vector<1x16x128xf32>
    %111 = vector.shape_cast %110 : vector<1x16x128xf32> to vector<16x128xf32>
    %112 = vector.shape_cast %109 : vector<16x128xf32> to vector<1x16x128xf32>
    tpu.vector_store %arg6[%c3_56, %c0_57, %c0_58], %112 {strides = array<i32>} : memref<8x16x128xf32, #tpu.memory_space<vmem>>, vector<1x16x128xf32>,
    %113 = vector.extract_strided_slice %96 {offsets = [0, 512], sizes = [16, 128], strides = [1, 1]} : vector<16x1024xf32> to vector<16x128xf32>
    %c4_59 = arith.constant 4 : index
    %c0_60 = arith.constant 0 : index
    %c0_61 = arith.constant 0 : index
    %114 = vector.load %arg6[%c4_59, %c0_60, %c0_61] : memref<8x16x128xf32, #tpu.memory_space<vmem>>, vector<1x16x128xf32>
    %115 = vector.shape_cast %114 : vector<1x16x128xf32> to vector<16x128xf32>
    %116 = vector.shape_cast %113 : vector<16x128xf32> to vector<1x16x128xf32>
    tpu.vector_store %arg6[%c4_59, %c0_60, %c0_61], %116 {strides = array<i32>} : memref<8x16x128xf32, #tpu.memory_space<vmem>>, vector<1x16x128xf32>,
    %117 = vector.extract_strided_slice %96 {offsets = [0, 640], sizes = [16, 128], strides = [1, 1]} : vector<16x1024xf32> to vector<16x128xf32>
    %c5_62 = arith.constant 5 : index
    %c0_63 = arith.constant 0 : index
    %c0_64 = arith.constant 0 : index
    %118 = vector.load %arg6[%c5_62, %c0_63, %c0_64] : memref<8x16x128xf32, #tpu.memory_space<vmem>>, vector<1x16x128xf32>
    %119 = vector.shape_cast %118 : vector<1x16x128xf32> to vector<16x128xf32>
    %120 = vector.shape_cast %117 : vector<16x128xf32> to vector<1x16x128xf32>
    tpu.vector_store %arg6[%c5_62, %c0_63, %c0_64], %120 {strides = array<i32>} : memref<8x16x128xf32, #tpu.memory_space<vmem>>, vector<1x16x128xf32>,
    %121 = vector.extract_strided_slice %96 {offsets = [0, 768], sizes = [16, 128], strides = [1, 1]} : vector<16x1024xf32> to vector<16x128xf32>
    %c6_65 = arith.constant 6 : index
    %c0_66 = arith.constant 0 : index
    %c0_67 = arith.constant 0 : index
    %122 = vector.load %arg6[%c6_65, %c0_66, %c0_67] : memref<8x16x128xf32, #tpu.memory_space<vmem>>, vector<1x16x128xf32>
    %123 = vector.shape_cast %122 : vector<1x16x128xf32> to vector<16x128xf32>
    %124 = vector.shape_cast %121 : vector<16x128xf32> to vector<1x16x128xf32>
    tpu.vector_store %arg6[%c6_65, %c0_66, %c0_67], %124 {strides = array<i32>} : memref<8x16x128xf32, #tpu.memory_space<vmem>>, vector<1x16x128xf32>,
    %125 = vector.extract_strided_slice %96 {offsets = [0, 896], sizes = [16, 128], strides = [1, 1]} : vector<16x1024xf32> to vector<16x128xf32>
    %c7_68 = arith.constant 7 : index
    %c0_69 = arith.constant 0 : index
    %c0_70 = arith.constant 0 : index
    %126 = vector.load %arg6[%c7_68, %c0_69, %c0_70] : memref<8x16x128xf32, #tpu.memory_space<vmem>>, vector<1x16x128xf32>
    %127 = vector.shape_cast %126 : vector<1x16x128xf32> to vector<16x128xf32>
    %128 = vector.shape_cast %125 : vector<16x128xf32> to vector<1x16x128xf32>
    tpu.vector_store %arg6[%c7_68, %c0_69, %c0_70], %128 {strides = array<i32>} : memref<8x16x128xf32, #tpu.memory_space<vmem>>, vector<1x16x128xf32>,
    return
  }
  func.func @transform_0(%arg0: i32) -> (i32, i32, i32) {
    %c0_i32 = arith.constant 0 : i32
    %c0_i32_0 = arith.constant 0 : i32
    %c0_i32_1 = arith.constant 0 : i32
    return %c0_i32, %c0_i32_0, %arg0 : i32, i32, i32
  }
  func.func @transform_1(%arg0: i32) -> (i32, i32, i32) {
    %c0_i32 = arith.constant 0 : i32
    %c0_i32_0 = arith.constant 0 : i32
    %c0_i32_1 = arith.constant 0 : i32
    %c0_i32_2 = arith.constant 0 : i32
    return %c0_i32, %c0_i32_0, %c0_i32_1 : i32, i32, i32
  }
  func.func @transform_2(%arg0: i32) -> (i32, i32, i32) {
    %c0_i32 = arith.constant 0 : i32
    %c0_i32_0 = arith.constant 0 : i32
    %c0_i32_1 = arith.constant 0 : i32
    %c0_i32_2 = arith.constant 0 : i32
    return %c0_i32, %c0_i32_0, %c0_i32_1 : i32, i32, i32
  }
  func.func @transform_3(%arg0: i32) -> (i32, i32, i32) {
    %c0_i32 = arith.constant 0 : i32
    %c0_i32_0 = arith.constant 0 : i32
    %c0_i32_1 = arith.constant 0 : i32
    %c0_i32_2 = arith.constant 0 : i32
    return %c0_i32, %c0_i32_0, %c0_i32_1 : i32, i32, i32
  }
  func.func @transform_4(%arg0: i32) -> (i32, i32, i32) {
    %c0_i32 = arith.constant 0 : i32
    %c0_i32_0 = arith.constant 0 : i32
    %c0_i32_1 = arith.constant 0 : i32
    %c0_i32_2 = arith.constant 0 : i32
    return %c0_i32, %c0_i32_0, %c0_i32_1 : i32, i32, i32
  }
  func.func @transform_5(%arg0: i32) -> (i32, i32, i32) {
    %c0_i32 = arith.constant 0 : i32
    %c0_i32_0 = arith.constant 0 : i32
    %c0_i32_1 = arith.constant 0 : i32
    return %c0_i32, %c0_i32_0, %arg0 : i32, i32, i32
  }
}

</mosaic_0001>

<llo_original>
// kernel: interactor_forward.1
$region0: #{interactor_forward.1}
  #allocation0 [shape = 'u32[]', space=smem, size = 0x4, offset = 0x4, fixed_abs, tag = 'smem constant byte address 0x4 - core index']
  #allocation1 [shape = 'u32[144,128]{1,0:T(1,128)}', space=vmem, size = 0x12000, scoped, tag = 'internal scratch']
  %s0 = inlined_call_operand.vmem [shape: f32[8,16,128], index: 0, kind: input, shape index: {}]
  %s1 = inlined_call_operand.vmem [shape: f32[2,16,80], index: 1, kind: input, shape index: {}]
  %s2 = inlined_call_operand.vmem [shape: f32[2,16,1], index: 2, kind: input, shape index: {}]
  %s3 = inlined_call_operand.vmem [shape: f32[2,16,48], index: 3, kind: input, shape index: {}]
  %s4 = inlined_call_operand.vmem [shape: f32[2,16,1], index: 4, kind: input, shape index: {}]
  %s5 = inlined_call_operand.vmem [shape: f32[8,16,128], index: 5, kind: output, shape index: {}]
  %s6 = sld [smem:[#allocation0]]
  $region30: #{interactor_forward.1} parent=0
    _
  %s8 = ssub.s32 1, %s6
  %s9 = scalar_select 0, %s8, %s6
  // Predicated region
  $region2: #{interactor_forward.1} parent=0 // pred_check
    _
  $region3: #{interactor_forward.1} parent=0 // pred_check_branch
    %11 = sbr.rel (0) target = $region5
  $region4: #{interactor_forward.1} parent=0 // pred_region
    _
  $region5: #{interactor_forward.1} parent=0 // pred_fallthru
    _
  // Predicated region
  $region6: #{interactor_forward.1} parent=0 // pred_check
    _
  $region7: #{interactor_forward.1} parent=0 // pred_check_branch
    %13 = sbr.rel (0) target = $region9
  $region8: #{interactor_forward.1} parent=0 // pred_region
    _
  $region9: #{interactor_forward.1} parent=0 // pred_fallthru
    _
  // Predicated region
  $region10: #{interactor_forward.1} parent=0 // pred_check
    _
  $region11: #{interactor_forward.1} parent=0 // pred_check_branch
    %15 = sbr.rel (0) target = $region13
  $region12: #{interactor_forward.1} parent=0 // pred_region
    _
  $region13: #{interactor_forward.1} parent=0 // pred_fallthru
    _
  // Predicated region
  $region14: #{interactor_forward.1} parent=0 // pred_check
    _
  $region15: #{interactor_forward.1} parent=0 // pred_check_branch
    %17 = sbr.rel (0) target = $region17
  $region16: #{interactor_forward.1} parent=0 // pred_region
    _
  $region17: #{interactor_forward.1} parent=0 // pred_fallthru
    _
  // Predicated region
  $region18: #{interactor_forward.1} parent=0 // pred_check
    _
  $region19: #{interactor_forward.1} parent=0 // pred_check_branch
    %19 = sbr.rel (0) target = $region21
  $region20: #{interactor_forward.1} parent=0 // pred_region
    _
  $region21: #{interactor_forward.1} parent=0 // pred_fallthru
    _
  %v20 = vld [vmem:[%s0] sm:$0xff]
  %v21 = vld [vmem:[%s0 + $0x8] sm:$0xff]
  %s22 = scalar_lea.vmem %s0, 16
  %v23 = vld [vmem:[%s22] sm:$0xff]
  %v24 = vld [vmem:[%s22 + $0x8] sm:$0xff]
  %s25 = scalar_lea.vmem %s0, 32
  %v26 = vld [vmem:[%s25] sm:$0xff]
  %v27 = vld [vmem:[%s25 + $0x8] sm:$0xff]
  %s28 = scalar_lea.vmem %s0, 48
  %v29 = vld [vmem:[%s28] sm:$0xff]
  %v30 = vld [vmem:[%s28 + $0x8] sm:$0xff]
  %s31 = scalar_lea.vmem %s0, 64
  %v32 = vld [vmem:[%s31] sm:$0xff]
  %v33 = vld [vmem:[%s31 + $0x8] sm:$0xff]
  %s34 = scalar_lea.vmem %s0, 80
  %v35 = vld [vmem:[%s34] sm:$0xff]
  %v36 = vld [vmem:[%s34 + $0x8] sm:$0xff]
  %s37 = scalar_lea.vmem %s0, 96
  %v38 = vld [vmem:[%s37] sm:$0xff]
  %v39 = vld [vmem:[%s37 + $0x8] sm:$0xff]
  %s40 = scalar_lea.vmem %s0, 112
  %v41 = vld [vmem:[%s40] sm:$0xff]
  %v42 = vld [vmem:[%s40 + $0x8] sm:$0xff]
  %v43 = vld [vmem:[%s1] sm:$0xff]
  %v44 = vld [vmem:[%s1 + $0x8] sm:$0xff]
  %v45 = vld [vmem:[%s2] sm:$0xff]
  %v46 = vld [vmem:[%s2 + $0x8] sm:$0xff]
  %v47 = vld [vmem:[%s3] sm:$0xff]
  %v48 = vld [vmem:[%s3 + $0x8] sm:$0xff]
  %v49 = vld [vmem:[%s4] sm:$0xff]
  %v50 = vld [vmem:[%s4 + $0x8] sm:$0xff]
  %52 = vset.pattern.permute.xlu0 0
  %53 = vperm.xlu0 %52, %v45
  %v54 = vpop.permute.xlu0 %53
  %57 = vset.pattern.permute.xlu0 0
  %58 = vperm.xlu0 %57, %v46
  %v59 = vpop.permute.xlu0 %58
  %vm61 = vcmask 654336
  %v63 = vsel %vm61, %v43, 0
  %v66 = vsel %vm61, %v44, 0
  %68 = vmatprep.subr.mxu0 %v20
  %69 = vmatpush1.msra.mxu0 %v20
  %70 = vmatprep.subr.mxu0 %v21
  %71 = vmatpush1.msra.mxu0 %v21
  %72 = vmatprep.subr.mxu0 %v20
  %73 = vmatpush1.msra.mxu0 %v20
  %74 = vmatprep.subr.mxu0 %v21
  %75 = vmatpush1.msra.mxu0 %v21
  %76 = vmatprep.subr.mxu0 %v20
  %77 = vmatpush1.msra.mxu0 %v20
  %78 = vmatprep.subr.mxu0 %v21
  %79 = vmatpush1.msra.mxu0 %v21
  %80 = vmatprep.subr.mxu0 %v23
  %81 = vmatpush1.msra.mxu0 %v20
  %82 = vmatprep.subr.mxu0 %v24
  %83 = vmatpush1.msra.mxu0 %v21
  %84 = vmatprep.subr.mxu0 %v26
  %85 = vmatpush1.msra.mxu0 %v23
  %86 = vmatprep.subr.mxu0 %v27
  %87 = vmatpush1.msra.mxu0 %v24
  %88 = vmatprep.subr.mxu0 0.0
  %89 = vmatpush1.msra.mxu0 0.0
  %90 = vmatprep.subr.mxu0 0.0
  %91 = vmatpush1.msra.mxu0 0.0
  %92 = vmatprep.subr.mxu0 0.0
  %93 = vmatpush1.msra.mxu0 0.0
  %94 = vmatprep.subr.mxu0 0.0
  %95 = vmatpush1.msra.mxu0 0.0
  %96 = vmatprep.subr.mxu0 0.0
  %97 = vmatpush1.msra.mxu0 0.0
  %98 = vmatprep.subr.mxu0 0.0
  %99 = vmatpush1.msra.mxu0 0.0
  %100 = vmatprep.subr.mxu0 0.0
  %101 = vmatpush1.msra.mxu0 0.0
  %102 = vmatprep.subr.mxu0 0.0
  %103 = vmatpush1.msra.mxu0 0.0
  %104 = vmatprep.subr.mxu0 0.0
  %105 = vmatpush1.msra.mxu0 0.0
  %106 = vmatprep.subr.mxu0 0.0
  %107 = vmatpush1.msra.mxu0 0.0
  %108 = vmatprep.subr.mxu0 0.0
  %109 = vmatpush1.msra.mxu0 0.0
  %110 = vmatprep.subr.mxu0 0.0
  %111 = vmatpush1.msra.mxu0 0.0
  %112 = vmatprep.subr.mxu0 0.0
  %113 = vmatpush1.msra.mxu0 0.0
  %114 = vmatprep.subr.mxu0 0.0
  %115 = vmatpush1.msra.mxu0 0.0
  %116 = vmatprep.subr.mxu0 0.0
  %117 = vmatpush1.msra.mxu0 0.0
  %118 = vmatprep.subr.mxu0 0.0
  %119 = vmatpush1.msra.mxu0 0.0
  %120 = vmatprep.subr.mxu0 0.0
  %121 = vmatpush1.msra.mxu0 0.0
  %122 = vmatprep.subr.mxu0 0.0
  %123 = vmatpush1.msra.mxu0 0.0
  %124 = vmatprep.subr.mxu0 0.0
  %125 = vmatpush1.msra.mxu0 0.0
  %126 = vmatprep.subr.mxu0 0.0
  %127 = vmatpush1.msra.mxu0 0.0
  %128 = vmatprep.subr.mxu0 0.0
  %129 = vmatpush1.msra.mxu0 0.0
  %130 = vmatprep.subr.mxu0 0.0
  %131 = vmatpush1.msra.mxu0 0.0
  %132 = vmatprep.mubr.f32.mxu0 0.0
  %133 = vmatmul.mubr.f32.gmra.mrb[0].mxu0 %v63
  %v134 = vpop.f32.mrb[0].mxu0
  %v135 = vadd.f32 %v54, %v134
  %v136 = vpop.f32.mrb[0].mxu0
  %v137 = vadd.f32 %v54, %v136
  %138 = vmatprep.mubr.f32.mxu0 0.0
  %139 = vmatmul.mubr.f32.gmra.mrb[0].mxu0 %v66
  %v140 = vpop.f32.mrb[0].mxu0
  %v141 = vadd.f32 %v59, %v140
  %v142 = vpop.f32.mrb[0].mxu0
  %v143 = vadd.f32 %v59, %v142
  %144 = vdwg.mxu0
  %145 = vmatprep.subr.mxu0 %v20
  %146 = vmatpush1.msra.mxu0 %v20
  %147 = vmatprep.subr.mxu0 %v21
  %148 = vmatpush1.msra.mxu0 %v21
  %149 = vmatprep.subr.mxu0 %v23
  %150 = vmatpush1.msra.mxu0 %v20
  %151 = vmatprep.subr.mxu0 %v24
  %152 = vmatpush1.msra.mxu0 %v21
  %153 = vmatprep.subr.mxu0 %v26
  %154 = vmatpush1.msra.mxu0 %v23
  %155 = vmatprep.subr.mxu0 %v27
  %156 = vmatpush1.msra.mxu0 %v24
  %157 = vmatprep.subr.mxu0 %v29
  %158 = vmatpush1.msra.mxu0 %v26
  %159 = vmatprep.subr.mxu0 %v30
  %160 = vmatpush1.msra.mxu0 %v27
  %161 = vmatprep.subr.mxu0 %v32
  %162 = vmatpush1.msra.mxu0 %v29
  %163 = vmatprep.subr.mxu0 %v33
  %164 = vmatpush1.msra.mxu0 %v30
  %165 = vmatprep.subr.mxu0 0.0
  %166 = vmatpush1.msra.mxu0 0.0
  %167 = vmatprep.subr.mxu0 0.0
  %168 = vmatpush1.msra.mxu0 0.0
  %169 = vmatprep.subr.mxu0 0.0
  %170 = vmatpush1.msra.mxu0 0.0
  %171 = vmatprep.subr.mxu0 0.0
  %172 = vmatpush1.msra.mxu0 0.0
  %173 = vmatprep.subr.mxu0 0.0
  %174 = vmatpush1.msra.mxu0 0.0
  %175 = vmatprep.subr.mxu0 0.0
  %176 = vmatpush1.msra.mxu0 0.0
  %177 = vmatprep.subr.mxu0 0.0
  %178 = vmatpush1.msra.mxu0 0.0
  %179 = vmatprep.subr.mxu0 0.0
  %180 = vmatpush1.msra.mxu0 0.0
  %181 = vmatprep.subr.mxu0 0.0
  %182 = vmatpush1.msra.mxu0 0.0
  %183 = vmatprep.subr.mxu0 0.0
  %184 = vmatpush1.msra.mxu0 0.0
  %185 = vmatprep.subr.mxu0 0.0
  %186 = vmatpush1.msra.mxu0 0.0
  %187 = vmatprep.subr.mxu0 0.0
  %188 = vmatpush1.msra.mxu0 0.0
  %189 = vmatprep.subr.mxu0 0.0
  %190 = vmatpush1.msra.mxu0 0.0
  %191 = vmatprep.subr.mxu0 0.0
  %192 = vmatpush1.msra.mxu0 0.0
  %193 = vmatprep.subr.mxu0 0.0
  %194 = vmatpush1.msra.mxu0 0.0
  %195 = vmatprep.subr.mxu0 0.0
  %196 = vmatpush1.msra.mxu0 0.0
  %197 = vmatprep.subr.mxu0 0.0
  %198 = vmatpush1.msra.mxu0 0.0
  %199 = vmatprep.subr.mxu0 0.0
  %200 = vmatpush1.msra.mxu0 0.0
  %201 = vmatprep.subr.mxu0 0.0
  %202 = vmatpush1.msra.mxu0 0.0
  %203 = vmatprep.subr.mxu0 0.0
  %204 = vmatpush1.msra.mxu0 0.0
  %205 = vmatprep.subr.mxu0 0.0
  %206 = vmatpush1.msra.mxu0 0.0
  %207 = vmatprep.subr.mxu0 0.0
  %208 = vmatpush1.msra.mxu0 0.0
  %209 = vmatprep.mubr.f32.mxu0 0.0
  %210 = vmatmul.mubr.f32.gmra.mrb[0].mxu0 %v63
  %v211 = vpop.f32.mrb[0].mxu0
  %v212 = vadd.f32 %v54, %v211
  %v213 = vpop.f32.mrb[0].mxu0
  %v214 = vadd.f32 %v54, %v213
  %215 = vmatprep.mubr.f32.mxu0 0.0
  %216 = vmatmul.mubr.f32.gmra.mrb[0].mxu0 %v66
  %v217 = vpop.f32.mrb[0].mxu0
  %v218 = vadd.f32 %v59, %v217
  %v219 = vpop.f32.mrb[0].mxu0
  %v220 = vadd.f32 %v59, %v219
  %221 = vdwg.mxu0
  %222 = vmatprep.subr.mxu0 %v26
  %223 = vmatpush1.msra.mxu0 %v23
  %224 = vmatprep.subr.mxu0 %v27
  %225 = vmatpush1.msra.mxu0 %v24
  %226 = vmatprep.subr.mxu0 %v29
  %227 = vmatpush1.msra.mxu0 %v26
  %228 = vmatprep.subr.mxu0 %v30
  %229 = vmatpush1.msra.mxu0 %v27
  %230 = vmatprep.subr.mxu0 %v32
  %231 = vmatpush1.msra.mxu0 %v29
  %232 = vmatprep.subr.mxu0 %v33
  %233 = vmatpush1.msra.mxu0 %v30
  %234 = vmatprep.subr.mxu0 %v35
  %235 = vmatpush1.msra.mxu0 %v32
  %236 = vmatprep.subr.mxu0 %v36
  %237 = vmatpush1.msra.mxu0 %v33
  %238 = vmatprep.subr.mxu0 %v38
  %239 = vmatpush1.msra.mxu0 %v35
  %240 = vmatprep.subr.mxu0 %v39
  %241 = vmatpush1.msra.mxu0 %v36
  %242 = vmatprep.subr.mxu0 0.0
  %243 = vmatpush1.msra.mxu0 0.0
  %244 = vmatprep.subr.mxu0 0.0
  %245 = vmatpush1.msra.mxu0 0.0
  %246 = vmatprep.subr.mxu0 0.0
  %247 = vmatpush1.msra.mxu0 0.0
  %248 = vmatprep.subr.mxu0 0.0
  %249 = vmatpush1.msra.mxu0 0.0
  %250 = vmatprep.subr.mxu0 0.0
  %251 = vmatpush1.msra.mxu0 0.0
  %252 = vmatprep.subr.mxu0 0.0
  %253 = vmatpush1.msra.mxu0 0.0
  %254 = vmatprep.subr.mxu0 0.0
  %255 = vmatpush1.msra.mxu0 0.0
  %256 = vmatprep.subr.mxu0 0.0
  %257 = vmatpush1.msra.mxu0 0.0
  %258 = vmatprep.subr.mxu0 0.0
  %259 = vmatpush1.msra.mxu0 0.0
  %260 = vmatprep.subr.mxu0 0.0
  %261 = vmatpush1.msra.mxu0 0.0
  %262 = vmatprep.subr.mxu0 0.0
  %263 = vmatpush1.msra.mxu0 0.0
  %264 = vmatprep.subr.mxu0 0.0
  %265 = vmatpush1.msra.mxu0 0.0
  %266 = vmatprep.subr.mxu0 0.0
  %267 = vmatpush1.msra.mxu0 0.0
  %268 = vmatprep.subr.mxu0 0.0
  %269 = vmatpush1.msra.mxu0 0.0
  %270 = vmatprep.subr.mxu0 0.0
  %271 = vmatpush1.msra.mxu0 0.0
  %272 = vmatprep.subr.mxu0 0.0
  %273 = vmatpush1.msra.mxu0 0.0
  %274 = vmatprep.subr.mxu0 0.0
  %275 = vmatpush1.msra.mxu0 0.0
  %276 = vmatprep.subr.mxu0 0.0
  %277 = vmatpush1.msra.mxu0 0.0
  %278 = vmatprep.subr.mxu0 0.0
  %279 = vmatpush1.msra.mxu0 0.0
  %280 = vmatprep.subr.mxu0 0.0
  %281 = vmatpush1.msra.mxu0 0.0
  %282 = vmatprep.subr.mxu0 0.0
  %283 = vmatpush1.msra.mxu0 0.0
  %284 = vmatprep.subr.mxu0 0.0
  %285 = vmatpush1.msra.mxu0 0.0
  %286 = vmatprep.mubr.f32.mxu0 0.0
  %287 = vmatmul.mubr.f32.gmra.mrb[0].mxu0 %v63
  %v288 = vpop.f32.mrb[0].mxu0
  %v289 = vadd.f32 %v54, %v288
  %v290 = vpop.f32.mrb[0].mxu0
  %v291 = vadd.f32 %v54, %v290
  %292 = vmatprep.mubr.f32.mxu0 0.0
  %293 = vmatmul.mubr.f32.gmra.mrb[0].mxu0 %v66
  %v294 = vpop.f32.mrb[0].mxu0
  %v295 = vadd.f32 %v59, %v294
  %v296 = vpop.f32.mrb[0].mxu0
  %v297 = vadd.f32 %v59, %v296
  %298 = vdwg.mxu0
  %299 = vmatprep.subr.mxu0 %v32
  %300 = vmatpush1.msra.mxu0 %v29
  %301 = vmatprep.subr.mxu0 %v33
  %302 = vmatpush1.msra.mxu0 %v30
  %303 = vmatprep.subr.mxu0 %v35
  %304 = vmatpush1.msra.mxu0 %v32
  %305 = vmatprep.subr.mxu0 %v36
  %306 = vmatpush1.msra.mxu0 %v33
  %307 = vmatprep.subr.mxu0 %v38
  %308 = vmatpush1.msra.mxu0 %v35
  %309 = vmatprep.subr.mxu0 %v39
  %310 = vmatpush1.msra.mxu0 %v36
  %311 = vmatprep.subr.mxu0 %v41
  %312 = vmatpush1.msra.mxu0 %v38
  %313 = vmatprep.subr.mxu0 %v42
  %314 = vmatpush1.msra.mxu0 %v39
  %315 = vmatprep.subr.mxu0 %v41
  %316 = vmatpush1.msra.mxu0 %v41
  %317 = vmatprep.subr.mxu0 %v42
  %318 = vmatpush1.msra.mxu0 %v42
  %319 = vmatprep.subr.mxu0 0.0
  %320 = vmatpush1.msra.mxu0 0.0
  %321 = vmatprep.subr.mxu0 0.0
  %322 = vmatpush1.msra.mxu0 0.0
  %323 = vmatprep.subr.mxu0 0.0
  %324 = vmatpush1.msra.mxu0 0.0
  %325 = vmatprep.subr.mxu0 0.0
  %326 = vmatpush1.msra.mxu0 0.0
  %327 = vmatprep.subr.mxu0 0.0
  %328 = vmatpush1.msra.mxu0 0.0
  %329 = vmatprep.subr.mxu0 0.0
  %330 = vmatpush1.msra.mxu0 0.0
  %331 = vmatprep.subr.mxu0 0.0
  %332 = vmatpush1.msra.mxu0 0.0
  %333 = vmatprep.subr.mxu0 0.0
  %334 = vmatpush1.msra.mxu0 0.0
  %335 = vmatprep.subr.mxu0 0.0
  %336 = vmatpush1.msra.mxu0 0.0
  %337 = vmatprep.subr.mxu0 0.0
  %338 = vmatpush1.msra.mxu0 0.0
  %339 = vmatprep.subr.mxu0 0.0
  %340 = vmatpush1.msra.mxu0 0.0
  %341 = vmatprep.subr.mxu0 0.0
  %342 = vmatpush1.msra.mxu0 0.0
  %343 = vmatprep.subr.mxu0 0.0
  %344 = vmatpush1.msra.mxu0 0.0
  %345 = vmatprep.subr.mxu0 0.0
  %346 = vmatpush1.msra.mxu0 0.0
  %347 = vmatprep.subr.mxu0 0.0
  %348 = vmatpush1.msra.mxu0 0.0
  %349 = vmatprep.subr.mxu0 0.0
  %350 = vmatpush1.msra.mxu0 0.0
  %351 = vmatprep.subr.mxu0 0.0
  %352 = vmatpush1.msra.mxu0 0.0
  %353 = vmatprep.subr.mxu0 0.0
  %354 = vmatpush1.msra.mxu0 0.0
  %355 = vmatprep.subr.mxu0 0.0
  %356 = vmatpush1.msra.mxu0 0.0
  %357 = vmatprep.subr.mxu0 0.0
  %358 = vmatpush1.msra.mxu0 0.0
  %359 = vmatprep.subr.mxu0 0.0
  %360 = vmatpush1.msra.mxu0 0.0
  %361 = vmatprep.subr.mxu0 0.0
  %362 = vmatpush1.msra.mxu0 0.0
  %363 = vmatprep.mubr.f32.mxu0 0.0
  %364 = vmatmul.mubr.f32.gmra.mrb[0].mxu0 %v63
  %v365 = vpop.f32.mrb[0].mxu0
  %v366 = vadd.f32 %v54, %v365
  %v367 = vpop.f32.mrb[0].mxu0
  %v368 = vadd.f32 %v54, %v367
  %369 = vmatprep.mubr.f32.mxu0 0.0
  %370 = vmatmul.mubr.f32.gmra.mrb[0].mxu0 %v66
  %v371 = vpop.f32.mrb[0].mxu0
  %v372 = vadd.f32 %v59, %v371
  %v373 = vpop.f32.mrb[0].mxu0
  %v374 = vadd.f32 %v59, %v373
  %375 = vdwg.mxu0
  %376 = vmatprep.subr.mxu0 %v38
  %377 = vmatpush1.msra.mxu0 %v35
  %378 = vmatprep.subr.mxu0 %v39
  %379 = vmatpush1.msra.mxu0 %v36
  %380 = vmatprep.subr.mxu0 %v41
  %381 = vmatpush1.msra.mxu0 %v38
  %382 = vmatprep.subr.mxu0 %v42
  %383 = vmatpush1.msra.mxu0 %v39
  %384 = vmatprep.subr.mxu0 %v41
  %385 = vmatpush1.msra.mxu0 %v41
  %386 = vmatprep.subr.mxu0 %v42
  %387 = vmatpush1.msra.mxu0 %v42
  %388 = vmatprep.subr.mxu0 %v41
  %389 = vmatpush1.msra.mxu0 %v41
  %390 = vmatprep.subr.mxu0 %v42
  %391 = vmatpush1.msra.mxu0 %v42
  %392 = vmatprep.subr.mxu0 %v41
  %393 = vmatpush1.msra.mxu0 %v41
  %394 = vmatprep.subr.mxu0 %v42
  %395 = vmatpush1.msra.mxu0 %v42
  %396 = vmatprep.subr.mxu0 0.0
  %397 = vmatpush1.msra.mxu0 0.0
  %398 = vmatprep.subr.mxu0 0.0
  %399 = vmatpush1.msra.mxu0 0.0
  %400 = vmatprep.subr.mxu0 0.0
  %401 = vmatpush1.msra.mxu0 0.0
  %402 = vmatprep.subr.mxu0 0.0
  %403 = vmatpush1.msra.mxu0 0.0
  %404 = vmatprep.subr.mxu0 0.0
  %405 = vmatpush1.msra.mxu0 0.0
  %406 = vmatprep.subr.mxu0 0.0
  %407 = vmatpush1.msra.mxu0 0.0
  %408 = vmatprep.subr.mxu0 0.0
  %409 = vmatpush1.msra.mxu0 0.0
  %410 = vmatprep.subr.mxu0 0.0
  %411 = vmatpush1.msra.mxu0 0.0
  %412 = vmatprep.subr.mxu0 0.0
  %413 = vmatpush1.msra.mxu0 0.0
  %414 = vmatprep.subr.mxu0 0.0
  %415 = vmatpush1.msra.mxu0 0.0
  %416 = vmatprep.subr.mxu0 0.0
  %417 = vmatpush1.msra.mxu0 0.0
  %418 = vmatprep.subr.mxu0 0.0
  %419 = vmatpush1.msra.mxu0 0.0
  %420 = vmatprep.subr.mxu0 0.0
  %421 = vmatpush1.msra.mxu0 0.0
  %422 = vmatprep.subr.mxu0 0.0
  %423 = vmatpush1.msra.mxu0 0.0
  %424 = vmatprep.subr.mxu0 0.0
  %425 = vmatpush1.msra.mxu0 0.0
  %426 = vmatprep.subr.mxu0 0.0
  %427 = vmatpush1.msra.mxu0 0.0
  %428 = vmatprep.subr.mxu0 0.0
  %429 = vmatpush1.msra.mxu0 0.0
  %430 = vmatprep.subr.mxu0 0.0
  %431 = vmatpush1.msra.mxu0 0.0
  %432 = vmatprep.subr.mxu0 0.0
  %433 = vmatpush1.msra.mxu0 0.0
  %434 = vmatprep.subr.mxu0 0.0
  %435 = vmatpush1.msra.mxu0 0.0
  %436 = vmatprep.subr.mxu0 0.0
  %437 = vmatpush1.msra.mxu0 0.0
  %438 = vmatprep.subr.mxu0 0.0
  %439 = vmatpush1.msra.mxu0 0.0
  %440 = vmatprep.mubr.f32.mxu0 0.0
  %441 = vmatmul.mubr.f32.gmra.mrb[0].mxu0 %v63
  %v442 = vpop.f32.mrb[0].mxu0
  %v443 = vadd.f32 %v54, %v442
  %v444 = vpop.f32.mrb[0].mxu0
  %v445 = vadd.f32 %v54, %v444
  %446 = vmatprep.mubr.f32.mxu0 0.0
  %447 = vmatmul.mubr.f32.gmra.mrb[0].mxu0 %v66
  %v448 = vpop.f32.mrb[0].mxu0
  %v449 = vadd.f32 %v59, %v448
  %v450 = vpop.f32.mrb[0].mxu0
  %v451 = vadd.f32 %v59, %v450
  %452 = vdwg.mxu0
  %vm453 = vcmp.gt.f32.partialorder %v135, 0.0
  %vm454 = vcmp.gt.f32.partialorder %v137, 0.0
  %vm455 = vcmp.gt.f32.partialorder %v212, 0.0
  %vm456 = vcmp.gt.f32.partialorder %v214, 0.0
  %vm457 = vcmp.gt.f32.partialorder %v289, 0.0
  %vm458 = vcmp.gt.f32.partialorder %v291, 0.0
  %vm459 = vcmp.gt.f32.partialorder %v366, 0.0
  %vm460 = vcmp.gt.f32.partialorder %v368, 0.0
  %vm461 = vcmp.gt.f32.partialorder %v443, 0.0
  %vm462 = vcmp.gt.f32.partialorder %v445, 0.0
  %vm463 = vcmp.gt.f32.partialorder %v141, 0.0
  %vm464 = vcmp.gt.f32.partialorder %v143, 0.0
  %vm465 = vcmp.gt.f32.partialorder %v218, 0.0
  %vm466 = vcmp.gt.f32.partialorder %v220, 0.0
  %vm467 = vcmp.gt.f32.partialorder %v295, 0.0
  %vm468 = vcmp.gt.f32.partialorder %v297, 0.0
  %vm469 = vcmp.gt.f32.partialorder %v372, 0.0
  %vm470 = vcmp.gt.f32.partialorder %v374, 0.0
  %vm471 = vcmp.gt.f32.partialorder %v449, 0.0
  %vm472 = vcmp.gt.f32.partialorder %v451, 0.0
  %v473 = vmul.f32 %v135, 0.01
  %v474 = vmul.f32 %v137, 0.01
  %v475 = vmul.f32 %v212, 0.01
  %v476 = vmul.f32 %v214, 0.01
  %v477 = vmul.f32 %v289, 0.01
  %v478 = vmul.f32 %v291, 0.01
  %v479 = vmul.f32 %v366, 0.01
  %v480 = vmul.f32 %v368, 0.01
  %v481 = vmul.f32 %v443, 0.01
  %v482 = vmul.f32 %v445, 0.01
  %v483 = vmul.f32 %v141, 0.01
  %v484 = vmul.f32 %v143, 0.01
  %v485 = vmul.f32 %v218, 0.01
  %v486 = vmul.f32 %v220, 0.01
  %v487 = vmul.f32 %v295, 0.01
  %v488 = vmul.f32 %v297, 0.01
  %v489 = vmul.f32 %v372, 0.01
  %v490 = vmul.f32 %v374, 0.01
  %v491 = vmul.f32 %v449, 0.01
  %v492 = vmul.f32 %v451, 0.01
  %v493 = vsel %vm453, %v135, %v473
  %v494 = vsel %vm454, %v137, %v474
  %v495 = vsel %vm455, %v212, %v475
  %v496 = vsel %vm456, %v214, %v476
  %v497 = vsel %vm457, %v289, %v477
  %v498 = vsel %vm458, %v291, %v478
  %v499 = vsel %vm459, %v366, %v479
  %v500 = vsel %vm460, %v368, %v480
  %v501 = vsel %vm461, %v443, %v481
  %v502 = vsel %vm462, %v445, %v482
  %v503 = vsel %vm463, %v141, %v483
  %v504 = vsel %vm464, %v143, %v484
  %v505 = vsel %vm465, %v218, %v485
  %v506 = vsel %vm466, %v220, %v486
  %v507 = vsel %vm467, %v295, %v487
  %v508 = vsel %vm468, %v297, %v488
  %v509 = vsel %vm469, %v372, %v489
  %v510 = vsel %vm470, %v374, %v490
  %v511 = vsel %vm471, %v449, %v491
  %v512 = vsel %vm472, %v451, %v492
  %514 = vset.pattern.permute.xlu0 0
  %515 = vperm.xlu0 %514, %v49
  %v516 = vpop.permute.xlu0 %515
  %519 = vset.pattern.permute.xlu0 0
  %520 = vperm.xlu0 %519, %v50
  %v521 = vpop.permute.xlu0 %520
  %vm523 = vcmask 392192
  %v525 = vsel %vm523, %v47, 0
  %v528 = vsel %vm523, %v48, 0
  %530 = vmatprep.subr.mxu0 %v494
  %531 = vmatpush1.msra.mxu0 %v493
  %532 = vmatprep.subr.mxu0 %v504
  %533 = vmatpush1.msra.mxu0 %v503
  %534 = vmatprep.subr.mxu0 %v495
  %535 = vmatpush1.msra.mxu0 %v494
  %536 = vmatprep.subr.mxu0 %v505
  %537 = vmatpush1.msra.mxu0 %v504
  %538 = vmatprep.subr.mxu0 %v496
  %539 = vmatpush1.msra.mxu0 %v495
  %540 = vmatprep.subr.mxu0 %v506
  %541 = vmatpush1.msra.mxu0 %v505
  %542 = vmatprep.subr.mxu0 0.0
  %543 = vmatpush1.msra.mxu0 0.0
  %544 = vmatprep.subr.mxu0 0.0
  %545 = vmatpush1.msra.mxu0 0.0
  %546 = vmatprep.subr.mxu0 0.0
  %547 = vmatpush1.msra.mxu0 0.0
  %548 = vmatprep.subr.mxu0 0.0
  %549 = vmatpush1.msra.mxu0 0.0
  %550 = vmatprep.subr.mxu0 0.0
  %551 = vmatpush1.msra.mxu0 0.0
  %552 = vmatprep.subr.mxu0 0.0
  %553 = vmatpush1.msra.mxu0 0.0
  %554 = vmatprep.subr.mxu0 0.0
  %555 = vmatpush1.msra.mxu0 0.0
  %556 = vmatprep.subr.mxu0 0.0
  %557 = vmatpush1.msra.mxu0 0.0
  %558 = vmatprep.subr.mxu0 0.0
  %559 = vmatpush1.msra.mxu0 0.0
  %560 = vmatprep.subr.mxu0 0.0
  %561 = vmatpush1.msra.mxu0 0.0
  %562 = vmatprep.subr.mxu0 0.0
  %563 = vmatpush1.msra.mxu0 0.0
  %564 = vmatprep.subr.mxu0 0.0
  %565 = vmatpush1.msra.mxu0 0.0
  %566 = vmatprep.subr.mxu0 0.0
  %567 = vmatpush1.msra.mxu0 0.0
  %568 = vmatprep.subr.mxu0 0.0
  %569 = vmatpush1.msra.mxu0 0.0
  %570 = vmatprep.subr.mxu0 0.0
  %571 = vmatpush1.msra.mxu0 0.0
  %572 = vmatprep.subr.mxu0 0.0
  %573 = vmatpush1.msra.mxu0 0.0
  %574 = vmatprep.subr.mxu0 0.0
  %575 = vmatpush1.msra.mxu0 0.0
  %576 = vmatprep.subr.mxu0 0.0
  %577 = vmatpush1.msra.mxu0 0.0
  %578 = vmatprep.subr.mxu0 0.0
  %579 = vmatpush1.msra.mxu0 0.0
  %580 = vmatprep.subr.mxu0 0.0
  %581 = vmatpush1.msra.mxu0 0.0
  %582 = vmatprep.subr.mxu0 0.0
  %583 = vmatpush1.msra.mxu0 0.0
  %584 = vmatprep.subr.mxu0 0.0
  %585 = vmatpush1.msra.mxu0 0.0
  %586 = vmatprep.subr.mxu0 0.0
  %587 = vmatpush1.msra.mxu0 0.0
  %588 = vmatprep.subr.mxu0 0.0
  %589 = vmatpush1.msra.mxu0 0.0
  %590 = vmatprep.subr.mxu0 0.0
  %591 = vmatpush1.msra.mxu0 0.0
  %592 = vmatprep.subr.mxu0 0.0
  %593 = vmatpush1.msra.mxu0 0.0
  %594 = vmatprep.mubr.f32.mxu0 0.0
  %595 = vmatmul.mubr.f32.gmra.mrb[0].mxu0 %v525
  %v596 = vpop.f32.mrb[0].mxu0
  %v597 = vadd.f32 %v516, %v596
  %v598 = vpop.f32.mrb[0].mxu0
  %v599 = vadd.f32 %v516, %v598
  %600 = vmatprep.mubr.f32.mxu0 0.0
  %601 = vmatmul.mubr.f32.gmra.mrb[0].mxu0 %v528
  %v602 = vpop.f32.mrb[0].mxu0
  %v603 = vadd.f32 %v521, %v602
  %v604 = vpop.f32.mrb[0].mxu0
  %v605 = vadd.f32 %v521, %v604
  %606 = vdwg.mxu0
  %607 = vmatprep.subr.mxu0 %v496
  %608 = vmatpush1.msra.mxu0 %v495
  %609 = vmatprep.subr.mxu0 %v506
  %610 = vmatpush1.msra.mxu0 %v505
  %611 = vmatprep.subr.mxu0 %v497
  %612 = vmatpush1.msra.mxu0 %v496
  %613 = vmatprep.subr.mxu0 %v507
  %614 = vmatpush1.msra.mxu0 %v506
  %615 = vmatprep.subr.mxu0 %v498
  %616 = vmatpush1.msra.mxu0 %v497
  %617 = vmatprep.subr.mxu0 %v508
  %618 = vmatpush1.msra.mxu0 %v507
  %619 = vmatprep.subr.mxu0 0.0
  %620 = vmatpush1.msra.mxu0 0.0
  %621 = vmatprep.subr.mxu0 0.0
  %622 = vmatpush1.msra.mxu0 0.0
  %623 = vmatprep.subr.mxu0 0.0
  %624 = vmatpush1.msra.mxu0 0.0
  %625 = vmatprep.subr.mxu0 0.0
  %626 = vmatpush1.msra.mxu0 0.0
  %627 = vmatprep.subr.mxu0 0.0
  %628 = vmatpush1.msra.mxu0 0.0
  %629 = vmatprep.subr.mxu0 0.0
  %630 = vmatpush1.msra.mxu0 0.0
  %631 = vmatprep.subr.mxu0 0.0
  %632 = vmatpush1.msra.mxu0 0.0
  %633 = vmatprep.subr.mxu0 0.0
  %634 = vmatpush1.msra.mxu0 0.0
  %635 = vmatprep.subr.mxu0 0.0
  %636 = vmatpush1.msra.mxu0 0.0
  %637 = vmatprep.subr.mxu0 0.0
  %638 = vmatpush1.msra.mxu0 0.0
  %639 = vmatprep.subr.mxu0 0.0
  %640 = vmatpush1.msra.mxu0 0.0
  %641 = vmatprep.subr.mxu0 0.0
  %642 = vmatpush1.msra.mxu0 0.0
  %643 = vmatprep.subr.mxu0 0.0
  %644 = vmatpush1.msra.mxu0 0.0
  %645 = vmatprep.subr.mxu0 0.0
  %646 = vmatpush1.msra.mxu0 0.0
  %647 = vmatprep.subr.mxu0 0.0
  %648 = vmatpush1.msra.mxu0 0.0
  %649 = vmatprep.subr.mxu0 0.0
  %650 = vmatpush1.msra.mxu0 0.0
  %651 = vmatprep.subr.mxu0 0.0
  %652 = vmatpush1.msra.mxu0 0.0
  %653 = vmatprep.subr.mxu0 0.0
  %654 = vmatpush1.msra.mxu0 0.0
  %655 = vmatprep.subr.mxu0 0.0
  %656 = vmatpush1.msra.mxu0 0.0
  %657 = vmatprep.subr.mxu0 0.0
  %658 = vmatpush1.msra.mxu0 0.0
  %659 = vmatprep.subr.mxu0 0.0
  %660 = vmatpush1.msra.mxu0 0.0
  %661 = vmatprep.subr.mxu0 0.0
  %662 = vmatpush1.msra.mxu0 0.0
  %663 = vmatprep.subr.mxu0 0.0
  %664 = vmatpush1.msra.mxu0 0.0
  %665 = vmatprep.subr.mxu0 0.0
  %666 = vmatpush1.msra.mxu0 0.0
  %667 = vmatprep.subr.mxu0 0.0
  %668 = vmatpush1.msra.mxu0 0.0
  %669 = vmatprep.subr.mxu0 0.0
  %670 = vmatpush1.msra.mxu0 0.0
  %671 = vmatprep.mubr.f32.mxu0 0.0
  %672 = vmatmul.mubr.f32.gmra.mrb[0].mxu0 %v525
  %v673 = vpop.f32.mrb[0].mxu0
  %v674 = vadd.f32 %v516, %v673
  %v675 = vpop.f32.mrb[0].mxu0
  %v676 = vadd.f32 %v516, %v675
  %677 = vmatprep.mubr.f32.mxu0 0.0
  %678 = vmatmul.mubr.f32.gmra.mrb[0].mxu0 %v528
  %v679 = vpop.f32.mrb[0].mxu0
  %v680 = vadd.f32 %v521, %v679
  %v681 = vpop.f32.mrb[0].mxu0
  %v682 = vadd.f32 %v521, %v681
  %683 = vdwg.mxu0
  %684 = vmatprep.subr.mxu0 %v498
  %685 = vmatpush1.msra.mxu0 %v497
  %686 = vmatprep.subr.mxu0 %v508
  %687 = vmatpush1.msra.mxu0 %v507
  %688 = vmatprep.subr.mxu0 %v499
  %689 = vmatpush1.msra.mxu0 %v498
  %690 = vmatprep.subr.mxu0 %v509
  %691 = vmatpush1.msra.mxu0 %v508
  %692 = vmatprep.subr.mxu0 %v500
  %693 = vmatpush1.msra.mxu0 %v499
  %694 = vmatprep.subr.mxu0 %v510
  %695 = vmatpush1.msra.mxu0 %v509
  %696 = vmatprep.subr.mxu0 0.0
  %697 = vmatpush1.msra.mxu0 0.0
  %698 = vmatprep.subr.mxu0 0.0
  %699 = vmatpush1.msra.mxu0 0.0
  %700 = vmatprep.subr.mxu0 0.0
  %701 = vmatpush1.msra.mxu0 0.0
  %702 = vmatprep.subr.mxu0 0.0
  %703 = vmatpush1.msra.mxu0 0.0
  %704 = vmatprep.subr.mxu0 0.0
  %705 = vmatpush1.msra.mxu0 0.0
  %706 = vmatprep.subr.mxu0 0.0
  %707 = vmatpush1.msra.mxu0 0.0
  %708 = vmatprep.subr.mxu0 0.0
  %709 = vmatpush1.msra.mxu0 0.0
  %710 = vmatprep.subr.mxu0 0.0
  %711 = vmatpush1.msra.mxu0 0.0
  %712 = vmatprep.subr.mxu0 0.0
  %713 = vmatpush1.msra.mxu0 0.0
  %714 = vmatprep.subr.mxu0 0.0
  %715 = vmatpush1.msra.mxu0 0.0
  %716 = vmatprep.subr.mxu0 0.0
  %717 = vmatpush1.msra.mxu0 0.0
  %718 = vmatprep.subr.mxu0 0.0
  %719 = vmatpush1.msra.mxu0 0.0
  %720 = vmatprep.subr.mxu0 0.0
  %721 = vmatpush1.msra.mxu0 0.0
  %722 = vmatprep.subr.mxu0 0.0
  %723 = vmatpush1.msra.mxu0 0.0
  %724 = vmatprep.subr.mxu0 0.0
  %725 = vmatpush1.msra.mxu0 0.0
  %726 = vmatprep.subr.mxu0 0.0
  %727 = vmatpush1.msra.mxu0 0.0
  %728 = vmatprep.subr.mxu0 0.0
  %729 = vmatpush1.msra.mxu0 0.0
  %730 = vmatprep.subr.mxu0 0.0
  %731 = vmatpush1.msra.mxu0 0.0
  %732 = vmatprep.subr.mxu0 0.0
  %733 = vmatpush1.msra.mxu0 0.0
  %734 = vmatprep.subr.mxu0 0.0
  %735 = vmatpush1.msra.mxu0 0.0
  %736 = vmatprep.subr.mxu0 0.0
  %737 = vmatpush1.msra.mxu0 0.0
  %738 = vmatprep.subr.mxu0 0.0
  %739 = vmatpush1.msra.mxu0 0.0
  %740 = vmatprep.subr.mxu0 0.0
  %741 = vmatpush1.msra.mxu0 0.0
  %742 = vmatprep.subr.mxu0 0.0
  %743 = vmatpush1.msra.mxu0 0.0
  %744 = vmatprep.subr.mxu0 0.0
  %745 = vmatpush1.msra.mxu0 0.0
  %746 = vmatprep.subr.mxu0 0.0
  %747 = vmatpush1.msra.mxu0 0.0
  %748 = vmatprep.mubr.f32.mxu0 0.0
  %749 = vmatmul.mubr.f32.gmra.mrb[0].mxu0 %v525
  %v750 = vpop.f32.mrb[0].mxu0
  %v751 = vadd.f32 %v516, %v750
  %v752 = vpop.f32.mrb[0].mxu0
  %v753 = vadd.f32 %v516, %v752
  %754 = vmatprep.mubr.f32.mxu0 0.0
  %755 = vmatmul.mubr.f32.gmra.mrb[0].mxu0 %v528
  %v756 = vpop.f32.mrb[0].mxu0
  %v757 = vadd.f32 %v521, %v756
  %v758 = vpop.f32.mrb[0].mxu0
  %v759 = vadd.f32 %v521, %v758
  %760 = vdwg.mxu0
  %761 = vmatprep.subr.mxu0 %v500
  %762 = vmatpush1.msra.mxu0 %v499
  %763 = vmatprep.subr.mxu0 %v510
  %764 = vmatpush1.msra.mxu0 %v509
  %765 = vmatprep.subr.mxu0 %v501
  %766 = vmatpush1.msra.mxu0 %v500
  %767 = vmatprep.subr.mxu0 %v511
  %768 = vmatpush1.msra.mxu0 %v510
  %769 = vmatprep.subr.mxu0 %v502
  %770 = vmatpush1.msra.mxu0 %v501
  %771 = vmatprep.subr.mxu0 %v512
  %772 = vmatpush1.msra.mxu0 %v511
  %773 = vmatprep.subr.mxu0 0.0
  %774 = vmatpush1.msra.mxu0 0.0
  %775 = vmatprep.subr.mxu0 0.0
  %776 = vmatpush1.msra.mxu0 0.0
  %777 = vmatprep.subr.mxu0 0.0
  %778 = vmatpush1.msra.mxu0 0.0
  %779 = vmatprep.subr.mxu0 0.0
  %780 = vmatpush1.msra.mxu0 0.0
  %781 = vmatprep.subr.mxu0 0.0
  %782 = vmatpush1.msra.mxu0 0.0
  %783 = vmatprep.subr.mxu0 0.0
  %784 = vmatpush1.msra.mxu0 0.0
  %785 = vmatprep.subr.mxu0 0.0
  %786 = vmatpush1.msra.mxu0 0.0
  %787 = vmatprep.subr.mxu0 0.0
  %788 = vmatpush1.msra.mxu0 0.0
  %789 = vmatprep.subr.mxu0 0.0
  %790 = vmatpush1.msra.mxu0 0.0
  %791 = vmatprep.subr.mxu0 0.0
  %792 = vmatpush1.msra.mxu0 0.0
  %793 = vmatprep.subr.mxu0 0.0
  %794 = vmatpush1.msra.mxu0 0.0
  %795 = vmatprep.subr.mxu0 0.0
  %796 = vmatpush1.msra.mxu0 0.0
  %797 = vmatprep.subr.mxu0 0.0
  %798 = vmatpush1.msra.mxu0 0.0
  %799 = vmatprep.subr.mxu0 0.0
  %800 = vmatpush1.msra.mxu0 0.0
  %801 = vmatprep.subr.mxu0 0.0
  %802 = vmatpush1.msra.mxu0 0.0
  %803 = vmatprep.subr.mxu0 0.0
  %804 = vmatpush1.msra.mxu0 0.0
  %805 = vmatprep.subr.mxu0 0.0
  %806 = vmatpush1.msra.mxu0 0.0
  %807 = vmatprep.subr.mxu0 0.0
  %808 = vmatpush1.msra.mxu0 0.0
  %809 = vmatprep.subr.mxu0 0.0
  %810 = vmatpush1.msra.mxu0 0.0
  %811 = vmatprep.subr.mxu0 0.0
  %812 = vmatpush1.msra.mxu0 0.0
  %813 = vmatprep.subr.mxu0 0.0
  %814 = vmatpush1.msra.mxu0 0.0
  %815 = vmatprep.subr.mxu0 0.0
  %816 = vmatpush1.msra.mxu0 0.0
  %817 = vmatprep.subr.mxu0 0.0
  %818 = vmatpush1.msra.mxu0 0.0
  %819 = vmatprep.subr.mxu0 0.0
  %820 = vmatpush1.msra.mxu0 0.0
  %821 = vmatprep.subr.mxu0 0.0
  %822 = vmatpush1.msra.mxu0 0.0
  %823 = vmatprep.subr.mxu0 0.0
  %824 = vmatpush1.msra.mxu0 0.0
  %825 = vmatprep.mubr.f32.mxu0 0.0
  %826 = vmatmul.mubr.f32.gmra.mrb[0].mxu0 %v525
  %v827 = vpop.f32.mrb[0].mxu0
  %v828 = vadd.f32 %v516, %v827
  %v829 = vpop.f32.mrb[0].mxu0
  %v830 = vadd.f32 %v516, %v829
  %831 = vmatprep.mubr.f32.mxu0 0.0
  %832 = vmatmul.mubr.f32.gmra.mrb[0].mxu0 %v528
  %v833 = vpop.f32.mrb[0].mxu0
  %v834 = vadd.f32 %v521, %v833
  %v835 = vpop.f32.mrb[0].mxu0
  %v836 = vadd.f32 %v521, %v835
  %837 = vdwg.mxu0
  %v838 = vtanh.pop %v597
  %v839 = vtanh.pop %v599
  %v840 = vtanh.pop %v674
  %v841 = vtanh.pop %v676
  %v842 = vtanh.pop %v751
  %v843 = vtanh.pop %v753
  %v844 = vtanh.pop %v828
  %v845 = vtanh.pop %v830
  %v846 = vtanh.pop %v603
  %v847 = vtanh.pop %v605
  %v848 = vtanh.pop %v680
  %v849 = vtanh.pop %v682
  %v850 = vtanh.pop %v757
  %v851 = vtanh.pop %v759
  %v852 = vtanh.pop %v834
  %v853 = vtanh.pop %v836
  %v854 = vmul.f32 %v838, 1.442695
  %v855 = vpow.pop %v854
  %v856 = vmul.f32 %v839, 1.442695
  %v857 = vpow.pop %v856
  %v858 = vmul.f32 %v840, 1.442695
  %v859 = vpow.pop %v858
  %v860 = vmul.f32 %v841, 1.442695
  %v861 = vpow.pop %v860
  %v862 = vmul.f32 %v842, 1.442695
  %v863 = vpow.pop %v862
  %v864 = vmul.f32 %v843, 1.442695
  %v865 = vpow.pop %v864
  %v866 = vmul.f32 %v844, 1.442695
  %v867 = vpow.pop %v866
  %v868 = vmul.f32 %v845, 1.442695
  %v869 = vpow.pop %v868
  %v870 = vmul.f32 %v21, %v855
  %v871 = vmul.f32 %v24, %v857
  %v872 = vmul.f32 %v27, %v859
  %v873 = vmul.f32 %v30, %v861
  %v874 = vmul.f32 %v33, %v863
  %v875 = vmul.f32 %v36, %v865
  %v876 = vmul.f32 %v39, %v867
  %v877 = vmul.f32 %v42, %v869
  %v878 = vmul.f32 %v846, 1.442695
  %v879 = vpow.pop %v878
  %v880 = vmul.f32 %v847, 1.442695
  %v881 = vpow.pop %v880
  %v882 = vmul.f32 %v848, 1.442695
  %v883 = vpow.pop %v882
  %v884 = vmul.f32 %v849, 1.442695
  %v885 = vpow.pop %v884
  %v886 = vmul.f32 %v850, 1.442695
  %v887 = vpow.pop %v886
  %v888 = vmul.f32 %v851, 1.442695
  %v889 = vpow.pop %v888
  %v890 = vmul.f32 %v852, 1.442695
  %v891 = vpow.pop %v890
  %v892 = vmul.f32 %v853, 1.442695
  %v893 = vpow.pop %v892
  %v894 = vmul.f32 %v20, %v879
  %v895 = vmul.f32 %v23, %v881
  %v896 = vmul.f32 %v26, %v883
  %v897 = vmul.f32 %v29, %v885
  %v898 = vmul.f32 %v32, %v887
  %v899 = vmul.f32 %v35, %v889
  %v900 = vmul.f32 %v38, %v891
  %v901 = vmul.f32 %v41, %v893
  %s902 = scalar_lea.vmem %s1, 16
  %v903 = vld [vmem:[%s902] sm:$0xff]
  %v904 = vld [vmem:[%s902 + $0x8] sm:$0xff]
  %s905 = scalar_lea.vmem %s2, 16
  %v906 = vld [vmem:[%s905] sm:$0xff]
  %v907 = vld [vmem:[%s905 + $0x8] sm:$0xff]
  %s908 = scalar_lea.vmem %s3, 16
  %v909 = vld [vmem:[%s908] sm:$0xff]
  %v910 = vld [vmem:[%s908 + $0x8] sm:$0xff]
  %s911 = scalar_lea.vmem %s4, 16
  %v912 = vld [vmem:[%s911] sm:$0xff]
  %v913 = vld [vmem:[%s911 + $0x8] sm:$0xff]
  %915 = vset.pattern.permute.xlu0 0
  %916 = vperm.xlu0 %915, %v906
  %v917 = vpop.permute.xlu0 %916
  %920 = vset.pattern.permute.xlu0 0
  %921 = vperm.xlu0 %920, %v907
  %v922 = vpop.permute.xlu0 %921
  %v925 = vsel %vm61, %v903, 0
  %v928 = vsel %vm61, %v904, 0
  %930 = vmatprep.subr.mxu0 %v870
  %931 = vmatpush1.msra.mxu0 %v870
  %932 = vmatprep.subr.mxu0 %v894
  %933 = vmatpush1.msra.mxu0 %v894
  %934 = vmatprep.subr.mxu0 %v870
  %935 = vmatpush1.msra.mxu0 %v870
  %936 = vmatprep.subr.mxu0 %v894
  %937 = vmatpush1.msra.mxu0 %v894
  %938 = vmatprep.subr.mxu0 %v870
  %939 = vmatpush1.msra.mxu0 %v870
  %940 = vmatprep.subr.mxu0 %v894
  %941 = vmatpush1.msra.mxu0 %v894
  %942 = vmatprep.subr.mxu0 %v871
  %943 = vmatpush1.msra.mxu0 %v870
  %944 = vmatprep.subr.mxu0 %v895
  %945 = vmatpush1.msra.mxu0 %v894
  %946 = vmatprep.subr.mxu0 %v872
  %947 = vmatpush1.msra.mxu0 %v871
  %948 = vmatprep.subr.mxu0 %v896
  %949 = vmatpush1.msra.mxu0 %v895
  %950 = vmatprep.subr.mxu0 0.0
  %951 = vmatpush1.msra.mxu0 0.0
  %952 = vmatprep.subr.mxu0 0.0
  %953 = vmatpush1.msra.mxu0 0.0
  %954 = vmatprep.subr.mxu0 0.0
  %955 = vmatpush1.msra.mxu0 0.0
  %956 = vmatprep.subr.mxu0 0.0
  %957 = vmatpush1.msra.mxu0 0.0
  %958 = vmatprep.subr.mxu0 0.0
  %959 = vmatpush1.msra.mxu0 0.0
  %960 = vmatprep.subr.mxu0 0.0
  %961 = vmatpush1.msra.mxu0 0.0
  %962 = vmatprep.subr.mxu0 0.0
  %963 = vmatpush1.msra.mxu0 0.0
  %964 = vmatprep.subr.mxu0 0.0
  %965 = vmatpush1.msra.mxu0 0.0
  %966 = vmatprep.subr.mxu0 0.0
  %967 = vmatpush1.msra.mxu0 0.0
  %968 = vmatprep.subr.mxu0 0.0
  %969 = vmatpush1.msra.mxu0 0.0
  %970 = vmatprep.subr.mxu0 0.0
  %971 = vmatpush1.msra.mxu0 0.0
  %972 = vmatprep.subr.mxu0 0.0
  %973 = vmatpush1.msra.mxu0 0.0
  %974 = vmatprep.subr.mxu0 0.0
  %975 = vmatpush1.msra.mxu0 0.0
  %976 = vmatprep.subr.mxu0 0.0
  %977 = vmatpush1.msra.mxu0 0.0
  %978 = vmatprep.subr.mxu0 0.0
  %979 = vmatpush1.msra.mxu0 0.0
  %980 = vmatprep.subr.mxu0 0.0
  %981 = vmatpush1.msra.mxu0 0.0
  %982 = vmatprep.subr.mxu0 0.0
  %983 = vmatpush1.msra.mxu0 0.0
  %984 = vmatprep.subr.mxu0 0.0
  %985 = vmatpush1.msra.mxu0 0.0
  %986 = vmatprep.subr.mxu0 0.0
  %987 = vmatpush1.msra.mxu0 0.0
  %988 = vmatprep.subr.mxu0 0.0
  %989 = vmatpush1.msra.mxu0 0.0
  %990 = vmatprep.subr.mxu0 0.0
  %991 = vmatpush1.msra.mxu0 0.0
  %992 = vmatprep.subr.mxu0 0.0
  %993 = vmatpush1.msra.mxu0 0.0
  %994 = vmatprep.mubr.f32.mxu0 0.0
  %995 = vmatmul.mubr.f32.gmra.mrb[0].mxu0 %v925
  %v996 = vpop.f32.mrb[0].mxu0
  %v997 = vadd.f32 %v917, %v996
  %v998 = vpop.f32.mrb[0].mxu0
  %v999 = vadd.f32 %v917, %v998
  %1000 = vmatprep.mubr.f32.mxu0 0.0
  %1001 = vmatmul.mubr.f32.gmra.mrb[0].mxu0 %v928
  %v1002 = vpop.f32.mrb[0].mxu0
  %v1003 = vadd.f32 %v922, %v1002
  %v1004 = vpop.f32.mrb[0].mxu0
  %v1005 = vadd.f32 %v922, %v1004
  %1006 = vdwg.mxu0
  %1007 = vmatprep.subr.mxu0 %v870
  %1008 = vmatpush1.msra.mxu0 %v870
  %1009 = vmatprep.subr.mxu0 %v894
  %1010 = vmatpush1.msra.mxu0 %v894
  %1011 = vmatprep.subr.mxu0 %v871
  %1012 = vmatpush1.msra.mxu0 %v870
  %1013 = vmatprep.subr.mxu0 %v895
  %1014 = vmatpush1.msra.mxu0 %v894
  %1015 = vmatprep.subr.mxu0 %v872
  %1016 = vmatpush1.msra.mxu0 %v871
  %1017 = vmatprep.subr.mxu0 %v896
  %1018 = vmatpush1.msra.mxu0 %v895
  %1019 = vmatprep.subr.mxu0 %v873
  %1020 = vmatpush1.msra.mxu0 %v872
  %1021 = vmatprep.subr.mxu0 %v897
  %1022 = vmatpush1.msra.mxu0 %v896
  %1023 = vmatprep.subr.mxu0 %v874
  %1024 = vmatpush1.msra.mxu0 %v873
  %1025 = vmatprep.subr.mxu0 %v898
  %1026 = vmatpush1.msra.mxu0 %v897
  %1027 = vmatprep.subr.mxu0 0.0
  %1028 = vmatpush1.msra.mxu0 0.0
  %1029 = vmatprep.subr.mxu0 0.0
  %1030 = vmatpush1.msra.mxu0 0.0
  %1031 = vmatprep.subr.mxu0 0.0
  %1032 = vmatpush1.msra.mxu0 0.0
  %1033 = vmatprep.subr.mxu0 0.0
  %1034 = vmatpush1.msra.mxu0 0.0
  %1035 = vmatprep.subr.mxu0 0.0
  %1036 = vmatpush1.msra.mxu0 0.0
  %1037 = vmatprep.subr.mxu0 0.0
  %1038 = vmatpush1.msra.mxu0 0.0
  %1039 = vmatprep.subr.mxu0 0.0
  %1040 = vmatpush1.msra.mxu0 0.0
  %1041 = vmatprep.subr.mxu0 0.0
  %1042 = vmatpush1.msra.mxu0 0.0
  %1043 = vmatprep.subr.mxu0 0.0
  %1044 = vmatpush1.msra.mxu0 0.0
  %1045 = vmatprep.subr.mxu0 0.0
  %1046 = vmatpush1.msra.mxu0 0.0
  %1047 = vmatprep.subr.mxu0 0.0
  %1048 = vmatpush1.msra.mxu0 0.0
  %1049 = vmatprep.subr.mxu0 0.0
  %1050 = vmatpush1.msra.mxu0 0.0
  %1051 = vmatprep.subr.mxu0 0.0
  %1052 = vmatpush1.msra.mxu0 0.0
  %1053 = vmatprep.subr.mxu0 0.0
  %1054 = vmatpush1.msra.mxu0 0.0
  %1055 = vmatprep.subr.mxu0 0.0
  %1056 = vmatpush1.msra.mxu0 0.0
  %1057 = vmatprep.subr.mxu0 0.0
  %1058 = vmatpush1.msra.mxu0 0.0
  %1059 = vmatprep.subr.mxu0 0.0
  %1060 = vmatpush1.msra.mxu0 0.0
  %1061 = vmatprep.subr.mxu0 0.0
  %1062 = vmatpush1.msra.mxu0 0.0
  %1063 = vmatprep.subr.mxu0 0.0
  %1064 = vmatpush1.msra.mxu0 0.0
  %1065 = vmatprep.subr.mxu0 0.0
  %1066 = vmatpush1.msra.mxu0 0.0
  %1067 = vmatprep.subr.mxu0 0.0
  %1068 = vmatpush1.msra.mxu0 0.0
  %1069 = vmatprep.subr.mxu0 0.0
  %1070 = vmatpush1.msra.mxu0 0.0
  %1071 = vmatprep.mubr.f32.mxu0 0.0
  %1072 = vmatmul.mubr.f32.gmra.mrb[0].mxu0 %v925
  %v1073 = vpop.f32.mrb[0].mxu0
  %v1074 = vadd.f32 %v917, %v1073
  %v1075 = vpop.f32.mrb[0].mxu0
  %v1076 = vadd.f32 %v917, %v1075
  %1077 = vmatprep.mubr.f32.mxu0 0.0
  %1078 = vmatmul.mubr.f32.gmra.mrb[0].mxu0 %v928
  %v1079 = vpop.f32.mrb[0].mxu0
  %v1080 = vadd.f32 %v922, %v1079
  %v1081 = vpop.f32.mrb[0].mxu0
  %v1082 = vadd.f32 %v922, %v1081
  %1083 = vdwg.mxu0
  %1084 = vmatprep.subr.mxu0 %v872
  %1085 = vmatpush1.msra.mxu0 %v871
  %1086 = vmatprep.subr.mxu0 %v896
  %1087 = vmatpush1.msra.mxu0 %v895
  %1088 = vmatprep.subr.mxu0 %v873
  %1089 = vmatpush1.msra.mxu0 %v872
  %1090 = vmatprep.subr.mxu0 %v897
  %1091 = vmatpush1.msra.mxu0 %v896
  %1092 = vmatprep.subr.mxu0 %v874
  %1093 = vmatpush1.msra.mxu0 %v873
  %1094 = vmatprep.subr.mxu0 %v898
  %1095 = vmatpush1.msra.mxu0 %v897
  %1096 = vmatprep.subr.mxu0 %v875
  %1097 = vmatpush1.msra.mxu0 %v874
  %1098 = vmatprep.subr.mxu0 %v899
  %1099 = vmatpush1.msra.mxu0 %v898
  %1100 = vmatprep.subr.mxu0 %v876
  %1101 = vmatpush1.msra.mxu0 %v875
  %1102 = vmatprep.subr.mxu0 %v900
  %1103 = vmatpush1.msra.mxu0 %v899
  %1104 = vmatprep.subr.mxu0 0.0
  %1105 = vmatpush1.msra.mxu0 0.0
  %1106 = vmatprep.subr.mxu0 0.0
  %1107 = vmatpush1.msra.mxu0 0.0
  %1108 = vmatprep.subr.mxu0 0.0
  %1109 = vmatpush1.msra.mxu0 0.0
  %1110 = vmatprep.subr.mxu0 0.0
  %1111 = vmatpush1.msra.mxu0 0.0
  %1112 = vmatprep.subr.mxu0 0.0
  %1113 = vmatpush1.msra.mxu0 0.0
  %1114 = vmatprep.subr.mxu0 0.0
  %1115 = vmatpush1.msra.mxu0 0.0
  %1116 = vmatprep.subr.mxu0 0.0
  %1117 = vmatpush1.msra.mxu0 0.0
  %1118 = vmatprep.subr.mxu0 0.0
  %1119 = vmatpush1.msra.mxu0 0.0
  %1120 = vmatprep.subr.mxu0 0.0
  %1121 = vmatpush1.msra.mxu0 0.0
  %1122 = vmatprep.subr.mxu0 0.0
  %1123 = vmatpush1.msra.mxu0 0.0
  %1124 = vmatprep.subr.mxu0 0.0
  %1125 = vmatpush1.msra.mxu0 0.0
  %1126 = vmatprep.subr.mxu0 0.0
  %1127 = vmatpush1.msra.mxu0 0.0
  %1128 = vmatprep.subr.mxu0 0.0
  %1129 = vmatpush1.msra.mxu0 0.0
  %1130 = vmatprep.subr.mxu0 0.0
  %1131 = vmatpush1.msra.mxu0 0.0
  %1132 = vmatprep.subr.mxu0 0.0
  %1133 = vmatpush1.msra.mxu0 0.0
  %1134 = vmatprep.subr.mxu0 0.0
  %1135 = vmatpush1.msra.mxu0 0.0
  %1136 = vmatprep.subr.mxu0 0.0
  %1137 = vmatpush1.msra.mxu0 0.0
  %1138 = vmatprep.subr.mxu0 0.0
  %1139 = vmatpush1.msra.mxu0 0.0
  %1140 = vmatprep.subr.mxu0 0.0
  %1141 = vmatpush1.msra.mxu0 0.0
  %1142 = vmatprep.subr.mxu0 0.0
  %1143 = vmatpush1.msra.mxu0 0.0
  %1144 = vmatprep.subr.mxu0 0.0
  %1145 = vmatpush1.msra.mxu0 0.0
  %1146 = vmatprep.subr.mxu0 0.0
  %1147 = vmatpush1.msra.mxu0 0.0
  %1148 = vmatprep.mubr.f32.mxu0 0.0
  %1149 = vmatmul.mubr.f32.gmra.mrb[0].mxu0 %v925
  %v1150 = vpop.f32.mrb[0].mxu0
  %v1151 = vadd.f32 %v917, %v1150
  %v1152 = vpop.f32.mrb[0].mxu0
  %v1153 = vadd.f32 %v917, %v1152
  %1154 = vmatprep.mubr.f32.mxu0 0.0
  %1155 = vmatmul.mubr.f32.gmra.mrb[0].mxu0 %v928
  %v1156 = vpop.f32.mrb[0].mxu0
  %v1157 = vadd.f32 %v922, %v1156
  %v1158 = vpop.f32.mrb[0].mxu0
  %v1159 = vadd.f32 %v922, %v1158
  %1160 = vdwg.mxu0
  %1161 = vmatprep.subr.mxu0 %v874
  %1162 = vmatpush1.msra.mxu0 %v873
  %1163 = vmatprep.subr.mxu0 %v898
  %1164 = vmatpush1.msra.mxu0 %v897
  %1165 = vmatprep.subr.mxu0 %v875
  %1166 = vmatpush1.msra.mxu0 %v874
  %1167 = vmatprep.subr.mxu0 %v899
  %1168 = vmatpush1.msra.mxu0 %v898
  %1169 = vmatprep.subr.mxu0 %v876
  %1170 = vmatpush1.msra.mxu0 %v875
  %1171 = vmatprep.subr.mxu0 %v900
  %1172 = vmatpush1.msra.mxu0 %v899
  %1173 = vmatprep.subr.mxu0 %v877
  %1174 = vmatpush1.msra.mxu0 %v876
  %1175 = vmatprep.subr.mxu0 %v901
  %1176 = vmatpush1.msra.mxu0 %v900
  %1177 = vmatprep.subr.mxu0 %v877
  %1178 = vmatpush1.msra.mxu0 %v877
  %1179 = vmatprep.subr.mxu0 %v901
  %1180 = vmatpush1.msra.mxu0 %v901
  %1181 = vmatprep.subr.mxu0 0.0
  %1182 = vmatpush1.msra.mxu0 0.0
  %1183 = vmatprep.subr.mxu0 0.0
  %1184 = vmatpush1.msra.mxu0 0.0
  %1185 = vmatprep.subr.mxu0 0.0
  %1186 = vmatpush1.msra.mxu0 0.0
  %1187 = vmatprep.subr.mxu0 0.0
  %1188 = vmatpush1.msra.mxu0 0.0
  %1189 = vmatprep.subr.mxu0 0.0
  %1190 = vmatpush1.msra.mxu0 0.0
  %1191 = vmatprep.subr.mxu0 0.0
  %1192 = vmatpush1.msra.mxu0 0.0
  %1193 = vmatprep.subr.mxu0 0.0
  %1194 = vmatpush1.msra.mxu0 0.0
  %1195 = vmatprep.subr.mxu0 0.0
  %1196 = vmatpush1.msra.mxu0 0.0
  %1197 = vmatprep.subr.mxu0 0.0
  %1198 = vmatpush1.msra.mxu0 0.0
  %1199 = vmatprep.subr.mxu0 0.0
  %1200 = vmatpush1.msra.mxu0 0.0
  %1201 = vmatprep.subr.mxu0 0.0
  %1202 = vmatpush1.msra.mxu0 0.0
  %1203 = vmatprep.subr.mxu0 0.0
  %1204 = vmatpush1.msra.mxu0 0.0
  %1205 = vmatprep.subr.mxu0 0.0
  %1206 = vmatpush1.msra.mxu0 0.0
  %1207 = vmatprep.subr.mxu0 0.0
  %1208 = vmatpush1.msra.mxu0 0.0
  %1209 = vmatprep.subr.mxu0 0.0
  %1210 = vmatpush1.msra.mxu0 0.0
  %1211 = vmatprep.subr.mxu0 0.0
  %1212 = vmatpush1.msra.mxu0 0.0
  %1213 = vmatprep.subr.mxu0 0.0
  %1214 = vmatpush1.msra.mxu0 0.0
  %1215 = vmatprep.subr.mxu0 0.0
  %1216 = vmatpush1.msra.mxu0 0.0
  %1217 = vmatprep.subr.mxu0 0.0
  %1218 = vmatpush1.msra.mxu0 0.0
  %1219 = vmatprep.subr.mxu0 0.0
  %1220 = vmatpush1.msra.mxu0 0.0
  %1221 = vmatprep.subr.mxu0 0.0
  %1222 = vmatpush1.msra.mxu0 0.0
  %1223 = vmatprep.subr.mxu0 0.0
  %1224 = vmatpush1.msra.mxu0 0.0
  %1225 = vmatprep.mubr.f32.mxu0 0.0
  %1226 = vmatmul.mubr.f32.gmra.mrb[0].mxu0 %v925
  %v1227 = vpop.f32.mrb[0].mxu0
  %v1228 = vadd.f32 %v917, %v1227
  %v1229 = vpop.f32.mrb[0].mxu0
  %v1230 = vadd.f32 %v917, %v1229
  %1231 = vmatprep.mubr.f32.mxu0 0.0
  %1232 = vmatmul.mubr.f32.gmra.mrb[0].mxu0 %v928
  %v1233 = vpop.f32.mrb[0].mxu0
  %v1234 = vadd.f32 %v922, %v1233
  %v1235 = vpop.f32.mrb[0].mxu0
  %v1236 = vadd.f32 %v922, %v1235
  %1237 = vdwg.mxu0
  %1238 = vmatprep.subr.mxu0 %v876
  %1239 = vmatpush1.msra.mxu0 %v875
  %1240 = vmatprep.subr.mxu0 %v900
  %1241 = vmatpush1.msra.mxu0 %v899
  %1242 = vmatprep.subr.mxu0 %v877
  %1243 = vmatpush1.msra.mxu0 %v876
  %1244 = vmatprep.subr.mxu0 %v901
  %1245 = vmatpush1.msra.mxu0 %v900
  %1246 = vmatprep.subr.mxu0 %v877
  %1247 = vmatpush1.msra.mxu0 %v877
  %1248 = vmatprep.subr.mxu0 %v901
  %1249 = vmatpush1.msra.mxu0 %v901
  %1250 = vmatprep.subr.mxu0 %v877
  %1251 = vmatpush1.msra.mxu0 %v877
  %1252 = vmatprep.subr.mxu0 %v901
  %1253 = vmatpush1.msra.mxu0 %v901
  %1254 = vmatprep.subr.mxu0 %v877
  %1255 = vmatpush1.msra.mxu0 %v877
  %1256 = vmatprep.subr.mxu0 %v901
  %1257 = vmatpush1.msra.mxu0 %v901
  %1258 = vmatprep.subr.mxu0 0.0
  %1259 = vmatpush1.msra.mxu0 0.0
  %1260 = vmatprep.subr.mxu0 0.0
  %1261 = vmatpush1.msra.mxu0 0.0
  %1262 = vmatprep.subr.mxu0 0.0
  %1263 = vmatpush1.msra.mxu0 0.0
  %1264 = vmatprep.subr.mxu0 0.0
  %1265 = vmatpush1.msra.mxu0 0.0
  %1266 = vmatprep.subr.mxu0 0.0
  %1267 = vmatpush1.msra.mxu0 0.0
  %1268 = vmatprep.subr.mxu0 0.0
  %1269 = vmatpush1.msra.mxu0 0.0
  %1270 = vmatprep.subr.mxu0 0.0
  %1271 = vmatpush1.msra.mxu0 0.0
  %1272 = vmatprep.subr.mxu0 0.0
  %1273 = vmatpush1.msra.mxu0 0.0
  %1274 = vmatprep.subr.mxu0 0.0
  %1275 = vmatpush1.msra.mxu0 0.0
  %1276 = vmatprep.subr.mxu0 0.0
  %1277 = vmatpush1.msra.mxu0 0.0
  %1278 = vmatprep.subr.mxu0 0.0
  %1279 = vmatpush1.msra.mxu0 0.0
  %1280 = vmatprep.subr.mxu0 0.0
  %1281 = vmatpush1.msra.mxu0 0.0
  %1282 = vmatprep.subr.mxu0 0.0
  %1283 = vmatpush1.msra.mxu0 0.0
  %1284 = vmatprep.subr.mxu0 0.0
  %1285 = vmatpush1.msra.mxu0 0.0
  %1286 = vmatprep.subr.mxu0 0.0
  %1287 = vmatpush1.msra.mxu0 0.0
  %1288 = vmatprep.subr.mxu0 0.0
  %1289 = vmatpush1.msra.mxu0 0.0
  %1290 = vmatprep.subr.mxu0 0.0
  %1291 = vmatpush1.msra.mxu0 0.0
  %1292 = vmatprep.subr.mxu0 0.0
  %1293 = vmatpush1.msra.mxu0 0.0
  %1294 = vmatprep.subr.mxu0 0.0
  %1295 = vmatpush1.msra.mxu0 0.0
  %1296 = vmatprep.subr.mxu0 0.0
  %1297 = vmatpush1.msra.mxu0 0.0
  %1298 = vmatprep.subr.mxu0 0.0
  %1299 = vmatpush1.msra.mxu0 0.0
  %1300 = vmatprep.subr.mxu0 0.0
  %1301 = vmatpush1.msra.mxu0 0.0
  %1302 = vmatprep.mubr.f32.mxu0 0.0
  %1303 = vmatmul.mubr.f32.gmra.mrb[0].mxu0 %v925
  %v1304 = vpop.f32.mrb[0].mxu0
  %v1305 = vadd.f32 %v917, %v1304
  %v1306 = vpop.f32.mrb[0].mxu0
  %v1307 = vadd.f32 %v917, %v1306
  %1308 = vmatprep.mubr.f32.mxu0 0.0
  %1309 = vmatmul.mubr.f32.gmra.mrb[0].mxu0 %v928
  %v1310 = vpop.f32.mrb[0].mxu0
  %v1311 = vadd.f32 %v922, %v1310
  %v1312 = vpop.f32.mrb[0].mxu0
  %v1313 = vadd.f32 %v922, %v1312
  %1314 = vdwg.mxu0
  %vm1315 = vcmp.gt.f32.partialorder %v997, 0.0
  %vm1316 = vcmp.gt.f32.partialorder %v999, 0.0
  %vm1317 = vcmp.gt.f32.partialorder %v1074, 0.0
  %vm1318 = vcmp.gt.f32.partialorder %v1076, 0.0
  %vm1319 = vcmp.gt.f32.partialorder %v1151, 0.0
  %vm1320 = vcmp.gt.f32.partialorder %v1153, 0.0
  %vm1321 = vcmp.gt.f32.partialorder %v1228, 0.0
  %vm1322 = vcmp.gt.f32.partialorder %v1230, 0.0
  %vm1323 = vcmp.gt.f32.partialorder %v1305, 0.0
  %vm1324 = vcmp.gt.f32.partialorder %v1307, 0.0
  %vm1325 = vcmp.gt.f32.partialorder %v1003, 0.0
  %vm1326 = vcmp.gt.f32.partialorder %v1005, 0.0
  %vm1327 = vcmp.gt.f32.partialorder %v1080, 0.0
  %vm1328 = vcmp.gt.f32.partialorder %v1082, 0.0
  %vm1329 = vcmp.gt.f32.partialorder %v1157, 0.0
  %vm1330 = vcmp.gt.f32.partialorder %v1159, 0.0
  %vm1331 = vcmp.gt.f32.partialorder %v1234, 0.0
  %vm1332 = vcmp.gt.f32.partialorder %v1236, 0.0
  %vm1333 = vcmp.gt.f32.partialorder %v1311, 0.0
  %vm1334 = vcmp.gt.f32.partialorder %v1313, 0.0
  %v1335 = vmul.f32 %v997, 0.01
  %v1336 = vmul.f32 %v999, 0.01
  %v1337 = vmul.f32 %v1074, 0.01
  %v1338 = vmul.f32 %v1076, 0.01
  %v1339 = vmul.f32 %v1151, 0.01
  %v1340 = vmul.f32 %v1153, 0.01
  %v1341 = vmul.f32 %v1228, 0.01
  %v1342 = vmul.f32 %v1230, 0.01
  %v1343 = vmul.f32 %v1305, 0.01
  %v1344 = vmul.f32 %v1307, 0.01
  %v1345 = vmul.f32 %v1003, 0.01
  %v1346 = vmul.f32 %v1005, 0.01
  %v1347 = vmul.f32 %v1080, 0.01
  %v1348 = vmul.f32 %v1082, 0.01
  %v1349 = vmul.f32 %v1157, 0.01
  %v1350 = vmul.f32 %v1159, 0.01
  %v1351 = vmul.f32 %v1234, 0.01
  %v1352 = vmul.f32 %v1236, 0.01
  %v1353 = vmul.f32 %v1311, 0.01
  %v1354 = vmul.f32 %v1313, 0.01
  %v1355 = vsel %vm1315, %v997, %v1335
  %v1356 = vsel %vm1316, %v999, %v1336
  %v1357 = vsel %vm1317, %v1074, %v1337
  %v1358 = vsel %vm1318, %v1076, %v1338
  %v1359 = vsel %vm1319, %v1151, %v1339
  %v1360 = vsel %vm1320, %v1153, %v1340
  %v1361 = vsel %vm1321, %v1228, %v1341
  %v1362 = vsel %vm1322, %v1230, %v1342
  %v1363 = vsel %vm1323, %v1305, %v1343
  %v1364 = vsel %vm1324, %v1307, %v1344
  %v1365 = vsel %vm1325, %v1003, %v1345
  %v1366 = vsel %vm1326, %v1005, %v1346
  %v1367 = vsel %vm1327, %v1080, %v1347
  %v1368 = vsel %vm1328, %v1082, %v1348
  %v1369 = vsel %vm1329, %v1157, %v1349
  %v1370 = vsel %vm1330, %v1159, %v1350
  %v1371 = vsel %vm1331, %v1234, %v1351
  %v1372 = vsel %vm1332, %v1236, %v1352
  %v1373 = vsel %vm1333, %v1311, %v1353
  %v1374 = vsel %vm1334, %v1313, %v1354
  %1376 = vset.pattern.permute.xlu0 0
  %1377 = vperm.xlu0 %1376, %v912
  %v1378 = vpop.permute.xlu0 %1377
  %1381 = vset.pattern.permute.xlu0 0
  %1382 = vperm.xlu0 %1381, %v913
  %v1383 = vpop.permute.xlu0 %1382
  %v1386 = vsel %vm523, %v909, 0
  %v1389 = vsel %vm523, %v910, 0
  %1391 = vmatprep.subr.mxu0 %v1356
  %1392 = vmatpush1.msra.mxu0 %v1355
  %1393 = vmatprep.subr.mxu0 %v1366
  %1394 = vmatpush1.msra.mxu0 %v1365
  %1395 = vmatprep.subr.mxu0 %v1357
  %1396 = vmatpush1.msra.mxu0 %v1356
  %1397 = vmatprep.subr.mxu0 %v1367
  %1398 = vmatpush1.msra.mxu0 %v1366
  %1399 = vmatprep.subr.mxu0 %v1358
  %1400 = vmatpush1.msra.mxu0 %v1357
  %1401 = vmatprep.subr.mxu0 %v1368
  %1402 = vmatpush1.msra.mxu0 %v1367
  %1403 = vmatprep.subr.mxu0 0.0
  %1404 = vmatpush1.msra.mxu0 0.0
  %1405 = vmatprep.subr.mxu0 0.0
  %1406 = vmatpush1.msra.mxu0 0.0
  %1407 = vmatprep.subr.mxu0 0.0
  %1408 = vmatpush1.msra.mxu0 0.0
  %1409 = vmatprep.subr.mxu0 0.0
  %1410 = vmatpush1.msra.mxu0 0.0
  %1411 = vmatprep.subr.mxu0 0.0
  %1412 = vmatpush1.msra.mxu0 0.0
  %1413 = vmatprep.subr.mxu0 0.0
  %1414 = vmatpush1.msra.mxu0 0.0
  %1415 = vmatprep.subr.mxu0 0.0
  %1416 = vmatpush1.msra.mxu0 0.0
  %1417 = vmatprep.subr.mxu0 0.0
  %1418 = vmatpush1.msra.mxu0 0.0
  %1419 = vmatprep.subr.mxu0 0.0
  %1420 = vmatpush1.msra.mxu0 0.0
  %1421 = vmatprep.subr.mxu0 0.0
  %1422 = vmatpush1.msra.mxu0 0.0
  %1423 = vmatprep.subr.mxu0 0.0
  %1424 = vmatpush1.msra.mxu0 0.0
  %1425 = vmatprep.subr.mxu0 0.0
  %1426 = vmatpush1.msra.mxu0 0.0
  %1427 = vmatprep.subr.mxu0 0.0
  %1428 = vmatpush1.msra.mxu0 0.0
  %1429 = vmatprep.subr.mxu0 0.0
  %1430 = vmatpush1.msra.mxu0 0.0
  %1431 = vmatprep.subr.mxu0 0.0
  %1432 = vmatpush1.msra.mxu0 0.0
  %1433 = vmatprep.subr.mxu0 0.0
  %1434 = vmatpush1.msra.mxu0 0.0
  %1435 = vmatprep.subr.mxu0 0.0
  %1436 = vmatpush1.msra.mxu0 0.0
  %1437 = vmatprep.subr.mxu0 0.0
  %1438 = vmatpush1.msra.mxu0 0.0
  %1439 = vmatprep.subr.mxu0 0.0
  %1440 = vmatpush1.msra.mxu0 0.0
  %1441 = vmatprep.subr.mxu0 0.0
  %1442 = vmatpush1.msra.mxu0 0.0
  %1443 = vmatprep.subr.mxu0 0.0
  %1444 = vmatpush1.msra.mxu0 0.0
  %1445 = vmatprep.subr.mxu0 0.0
  %1446 = vmatpush1.msra.mxu0 0.0
  %1447 = vmatprep.subr.mxu0 0.0
  %1448 = vmatpush1.msra.mxu0 0.0
  %1449 = vmatprep.subr.mxu0 0.0
  %1450 = vmatpush1.msra.mxu0 0.0
  %1451 = vmatprep.subr.mxu0 0.0
  %1452 = vmatpush1.msra.mxu0 0.0
  %1453 = vmatprep.subr.mxu0 0.0
  %1454 = vmatpush1.msra.mxu0 0.0
  %1455 = vmatprep.mubr.f32.mxu0 0.0
  %1456 = vmatmul.mubr.f32.gmra.mrb[0].mxu0 %v1386
  %v1457 = vpop.f32.mrb[0].mxu0
  %v1458 = vadd.f32 %v1378, %v1457
  %v1459 = vpop.f32.mrb[0].mxu0
  %v1460 = vadd.f32 %v1378, %v1459
  %1461 = vmatprep.mubr.f32.mxu0 0.0
  %1462 = vmatmul.mubr.f32.gmra.mrb[0].mxu0 %v1389
  %v1463 = vpop.f32.mrb[0].mxu0
  %v1464 = vadd.f32 %v1383, %v1463
  %v1465 = vpop.f32.mrb[0].mxu0
  %v1466 = vadd.f32 %v1383, %v1465
  %1467 = vdwg.mxu0
  %1468 = vmatprep.subr.mxu0 %v1358
  %1469 = vmatpush1.msra.mxu0 %v1357
  %1470 = vmatprep.subr.mxu0 %v1368
  %1471 = vmatpush1.msra.mxu0 %v1367
  %1472 = vmatprep.subr.mxu0 %v1359
  %1473 = vmatpush1.msra.mxu0 %v1358
  %1474 = vmatprep.subr.mxu0 %v1369
  %1475 = vmatpush1.msra.mxu0 %v1368
  %1476 = vmatprep.subr.mxu0 %v1360
  %1477 = vmatpush1.msra.mxu0 %v1359
  %1478 = vmatprep.subr.mxu0 %v1370
  %1479 = vmatpush1.msra.mxu0 %v1369
  %1480 = vmatprep.subr.mxu0 0.0
  %1481 = vmatpush1.msra.mxu0 0.0
  %1482 = vmatprep.subr.mxu0 0.0
  %1483 = vmatpush1.msra.mxu0 0.0
  %1484 = vmatprep.subr.mxu0 0.0
  %1485 = vmatpush1.msra.mxu0 0.0
  %1486 = vmatprep.subr.mxu0 0.0
  %1487 = vmatpush1.msra.mxu0 0.0
  %1488 = vmatprep.subr.mxu0 0.0
  %1489 = vmatpush1.msra.mxu0 0.0
  %1490 = vmatprep.subr.mxu0 0.0
  %1491 = vmatpush1.msra.mxu0 0.0
  %1492 = vmatprep.subr.mxu0 0.0
  %1493 = vmatpush1.msra.mxu0 0.0
  %1494 = vmatprep.subr.mxu0 0.0
  %1495 = vmatpush1.msra.mxu0 0.0
  %1496 = vmatprep.subr.mxu0 0.0
  %1497 = vmatpush1.msra.mxu0 0.0
  %1498 = vmatprep.subr.mxu0 0.0
  %1499 = vmatpush1.msra.mxu0 0.0
  %1500 = vmatprep.subr.mxu0 0.0
  %1501 = vmatpush1.msra.mxu0 0.0
  %1502 = vmatprep.subr.mxu0 0.0
  %1503 = vmatpush1.msra.mxu0 0.0
  %1504 = vmatprep.subr.mxu0 0.0
  %1505 = vmatpush1.msra.mxu0 0.0
  %1506 = vmatprep.subr.mxu0 0.0
  %1507 = vmatpush1.msra.mxu0 0.0
  %1508 = vmatprep.subr.mxu0 0.0
  %1509 = vmatpush1.msra.mxu0 0.0
  %1510 = vmatprep.subr.mxu0 0.0
  %1511 = vmatpush1.msra.mxu0 0.0
  %1512 = vmatprep.subr.mxu0 0.0
  %1513 = vmatpush1.msra.mxu0 0.0
  %1514 = vmatprep.subr.mxu0 0.0
  %1515 = vmatpush1.msra.mxu0 0.0
  %1516 = vmatprep.subr.mxu0 0.0
  %1517 = vmatpush1.msra.mxu0 0.0
  %1518 = vmatprep.subr.mxu0 0.0
  %1519 = vmatpush1.msra.mxu0 0.0
  %1520 = vmatprep.subr.mxu0 0.0
  %1521 = vmatpush1.msra.mxu0 0.0
  %1522 = vmatprep.subr.mxu0 0.0
  %1523 = vmatpush1.msra.mxu0 0.0
  %1524 = vmatprep.subr.mxu0 0.0
  %1525 = vmatpush1.msra.mxu0 0.0
  %1526 = vmatprep.subr.mxu0 0.0
  %1527 = vmatpush1.msra.mxu0 0.0
  %1528 = vmatprep.subr.mxu0 0.0
  %1529 = vmatpush1.msra.mxu0 0.0
  %1530 = vmatprep.subr.mxu0 0.0
  %1531 = vmatpush1.msra.mxu0 0.0
  %1532 = vmatprep.mubr.f32.mxu0 0.0
  %1533 = vmatmul.mubr.f32.gmra.mrb[0].mxu0 %v1386
  %v1534 = vpop.f32.mrb[0].mxu0
  %v1535 = vadd.f32 %v1378, %v1534
  %v1536 = vpop.f32.mrb[0].mxu0
  %v1537 = vadd.f32 %v1378, %v1536
  %1538 = vmatprep.mubr.f32.mxu0 0.0
  %1539 = vmatmul.mubr.f32.gmra.mrb[0].mxu0 %v1389
  %v1540 = vpop.f32.mrb[0].mxu0
  %v1541 = vadd.f32 %v1383, %v1540
  %v1542 = vpop.f32.mrb[0].mxu0
  %v1543 = vadd.f32 %v1383, %v1542
  %1544 = vdwg.mxu0
  %1545 = vmatprep.subr.mxu0 %v1360
  %1546 = vmatpush1.msra.mxu0 %v1359
  %1547 = vmatprep.subr.mxu0 %v1370
  %1548 = vmatpush1.msra.mxu0 %v1369
  %1549 = vmatprep.subr.mxu0 %v1361
  %1550 = vmatpush1.msra.mxu0 %v1360
  %1551 = vmatprep.subr.mxu0 %v1371
  %1552 = vmatpush1.msra.mxu0 %v1370
  %1553 = vmatprep.subr.mxu0 %v1362
  %1554 = vmatpush1.msra.mxu0 %v1361
  %1555 = vmatprep.subr.mxu0 %v1372
  %1556 = vmatpush1.msra.mxu0 %v1371
  %1557 = vmatprep.subr.mxu0 0.0
  %1558 = vmatpush1.msra.mxu0 0.0
  %1559 = vmatprep.subr.mxu0 0.0
  %1560 = vmatpush1.msra.mxu0 0.0
  %1561 = vmatprep.subr.mxu0 0.0
  %1562 = vmatpush1.msra.mxu0 0.0
  %1563 = vmatprep.subr.mxu0 0.0
  %1564 = vmatpush1.msra.mxu0 0.0
  %1565 = vmatprep.subr.mxu0 0.0
  %1566 = vmatpush1.msra.mxu0 0.0
  %1567 = vmatprep.subr.mxu0 0.0
  %1568 = vmatpush1.msra.mxu0 0.0
  %1569 = vmatprep.subr.mxu0 0.0
  %1570 = vmatpush1.msra.mxu0 0.0
  %1571 = vmatprep.subr.mxu0 0.0
  %1572 = vmatpush1.msra.mxu0 0.0
  %1573 = vmatprep.subr.mxu0 0.0
  %1574 = vmatpush1.msra.mxu0 0.0
  %1575 = vmatprep.subr.mxu0 0.0
  %1576 = vmatpush1.msra.mxu0 0.0
  %1577 = vmatprep.subr.mxu0 0.0
  %1578 = vmatpush1.msra.mxu0 0.0
  %1579 = vmatprep.subr.mxu0 0.0
  %1580 = vmatpush1.msra.mxu0 0.0
  %1581 = vmatprep.subr.mxu0 0.0
  %1582 = vmatpush1.msra.mxu0 0.0
  %1583 = vmatprep.subr.mxu0 0.0
  %1584 = vmatpush1.msra.mxu0 0.0
  %1585 = vmatprep.subr.mxu0 0.0
  %1586 = vmatpush1.msra.mxu0 0.0
  %1587 = vmatprep.subr.mxu0 0.0
  %1588 = vmatpush1.msra.mxu0 0.0
  %1589 = vmatprep.subr.mxu0 0.0
  %1590 = vmatpush1.msra.mxu0 0.0
  %1591 = vmatprep.subr.mxu0 0.0
  %1592 = vmatpush1.msra.mxu0 0.0
  %1593 = vmatprep.subr.mxu0 0.0
  %1594 = vmatpush1.msra.mxu0 0.0
  %1595 = vmatprep.subr.mxu0 0.0
  %1596 = vmatpush1.msra.mxu0 0.0
  %1597 = vmatprep.subr.mxu0 0.0
  %1598 = vmatpush1.msra.mxu0 0.0
  %1599 = vmatprep.subr.mxu0 0.0
  %1600 = vmatpush1.msra.mxu0 0.0
  %1601 = vmatprep.subr.mxu0 0.0
  %1602 = vmatpush1.msra.mxu0 0.0
  %1603 = vmatprep.subr.mxu0 0.0
  %1604 = vmatpush1.msra.mxu0 0.0
  %1605 = vmatprep.subr.mxu0 0.0
  %1606 = vmatpush1.msra.mxu0 0.0
  %1607 = vmatprep.subr.mxu0 0.0
  %1608 = vmatpush1.msra.mxu0 0.0
  %1609 = vmatprep.mubr.f32.mxu0 0.0
  %1610 = vmatmul.mubr.f32.gmra.mrb[0].mxu0 %v1386
  %v1611 = vpop.f32.mrb[0].mxu0
  %v1612 = vadd.f32 %v1378, %v1611
  %v1613 = vpop.f32.mrb[0].mxu0
  %v1614 = vadd.f32 %v1378, %v1613
  %1615 = vmatprep.mubr.f32.mxu0 0.0
  %1616 = vmatmul.mubr.f32.gmra.mrb[0].mxu0 %v1389
  %v1617 = vpop.f32.mrb[0].mxu0
  %v1618 = vadd.f32 %v1383, %v1617
  %v1619 = vpop.f32.mrb[0].mxu0
  %v1620 = vadd.f32 %v1383, %v1619
  %1621 = vdwg.mxu0
  %1622 = vmatprep.subr.mxu0 %v1362
  %1623 = vmatpush1.msra.mxu0 %v1361
  %1624 = vmatprep.subr.mxu0 %v1372
  %1625 = vmatpush1.msra.mxu0 %v1371
  %1626 = vmatprep.subr.mxu0 %v1363
  %1627 = vmatpush1.msra.mxu0 %v1362
  %1628 = vmatprep.subr.mxu0 %v1373
  %1629 = vmatpush1.msra.mxu0 %v1372
  %1630 = vmatprep.subr.mxu0 %v1364
  %1631 = vmatpush1.msra.mxu0 %v1363
  %1632 = vmatprep.subr.mxu0 %v1374
  %1633 = vmatpush1.msra.mxu0 %v1373
  %1634 = vmatprep.subr.mxu0 0.0
  %1635 = vmatpush1.msra.mxu0 0.0
  %1636 = vmatprep.subr.mxu0 0.0
  %1637 = vmatpush1.msra.mxu0 0.0
  %1638 = vmatprep.subr.mxu0 0.0
  %1639 = vmatpush1.msra.mxu0 0.0
  %1640 = vmatprep.subr.mxu0 0.0
  %1641 = vmatpush1.msra.mxu0 0.0
  %1642 = vmatprep.subr.mxu0 0.0
  %1643 = vmatpush1.msra.mxu0 0.0
  %1644 = vmatprep.subr.mxu0 0.0
  %1645 = vmatpush1.msra.mxu0 0.0
  %1646 = vmatprep.subr.mxu0 0.0
  %1647 = vmatpush1.msra.mxu0 0.0
  %1648 = vmatprep.subr.mxu0 0.0
  %1649 = vmatpush1.msra.mxu0 0.0
  %1650 = vmatprep.subr.mxu0 0.0
  %1651 = vmatpush1.msra.mxu0 0.0
  %1652 = vmatprep.subr.mxu0 0.0
  %1653 = vmatpush1.msra.mxu0 0.0
  %1654 = vmatprep.subr.mxu0 0.0
  %1655 = vmatpush1.msra.mxu0 0.0
  %1656 = vmatprep.subr.mxu0 0.0
  %1657 = vmatpush1.msra.mxu0 0.0
  %1658 = vmatprep.subr.mxu0 0.0
  %1659 = vmatpush1.msra.mxu0 0.0
  %1660 = vmatprep.subr.mxu0 0.0
  %1661 = vmatpush1.msra.mxu0 0.0
  %1662 = vmatprep.subr.mxu0 0.0
  %1663 = vmatpush1.msra.mxu0 0.0
  %1664 = vmatprep.subr.mxu0 0.0
  %1665 = vmatpush1.msra.mxu0 0.0
  %1666 = vmatprep.subr.mxu0 0.0
  %1667 = vmatpush1.msra.mxu0 0.0
  %1668 = vmatprep.subr.mxu0 0.0
  %1669 = vmatpush1.msra.mxu0 0.0
  %1670 = vmatprep.subr.mxu0 0.0
  %1671 = vmatpush1.msra.mxu0 0.0
  %1672 = vmatprep.subr.mxu0 0.0
  %1673 = vmatpush1.msra.mxu0 0.0
  %1674 = vmatprep.subr.mxu0 0.0
  %1675 = vmatpush1.msra.mxu0 0.0
  %1676 = vmatprep.subr.mxu0 0.0
  %1677 = vmatpush1.msra.mxu0 0.0
  %1678 = vmatprep.subr.mxu0 0.0
  %1679 = vmatpush1.msra.mxu0 0.0
  %1680 = vmatprep.subr.mxu0 0.0
  %1681 = vmatpush1.msra.mxu0 0.0
  %1682 = vmatprep.subr.mxu0 0.0
  %1683 = vmatpush1.msra.mxu0 0.0
  %1684 = vmatprep.subr.mxu0 0.0
  %1685 = vmatpush1.msra.mxu0 0.0
  %1686 = vmatprep.mubr.f32.mxu0 0.0
  %1687 = vmatmul.mubr.f32.gmra.mrb[0].mxu0 %v1386
  %v1688 = vpop.f32.mrb[0].mxu0
  %v1689 = vadd.f32 %v1378, %v1688
  %v1690 = vpop.f32.mrb[0].mxu0
  %v1691 = vadd.f32 %v1378, %v1690
  %1692 = vmatprep.mubr.f32.mxu0 0.0
  %1693 = vmatmul.mubr.f32.gmra.mrb[0].mxu0 %v1389
  %v1694 = vpop.f32.mrb[0].mxu0
  %v1695 = vadd.f32 %v1383, %v1694
  %v1696 = vpop.f32.mrb[0].mxu0
  %v1697 = vadd.f32 %v1383, %v1696
  %1698 = vdwg.mxu0
  %v1699 = vtanh.pop %v1458
  %v1700 = vtanh.pop %v1460
  %v1701 = vtanh.pop %v1535
  %v1702 = vtanh.pop %v1537
  %v1703 = vtanh.pop %v1612
  %v1704 = vtanh.pop %v1614
  %v1705 = vtanh.pop %v1689
  %v1706 = vtanh.pop %v1691
  %v1707 = vtanh.pop %v1464
  %v1708 = vtanh.pop %v1466
  %v1709 = vtanh.pop %v1541
  %v1710 = vtanh.pop %v1543
  %v1711 = vtanh.pop %v1618
  %v1712 = vtanh.pop %v1620
  %v1713 = vtanh.pop %v1695
  %v1714 = vtanh.pop %v1697
  %v1715 = vadd.f32 %v894, %v1699
  %v1716 = vadd.f32 %v895, %v1700
  %v1717 = vadd.f32 %v896, %v1701
  %v1718 = vadd.f32 %v897, %v1702
  %v1719 = vadd.f32 %v898, %v1703
  %v1720 = vadd.f32 %v899, %v1704
  %v1721 = vadd.f32 %v900, %v1705
  %v1722 = vadd.f32 %v901, %v1706
  %v1723 = vsub.f32 %v870, %v1707
  %v1724 = vsub.f32 %v871, %v1708
  %v1725 = vsub.f32 %v872, %v1709
  %v1726 = vsub.f32 %v873, %v1710
  %v1727 = vsub.f32 %v874, %v1711
  %v1728 = vsub.f32 %v875, %v1712
  %v1729 = vsub.f32 %v876, %v1713
  %v1730 = vsub.f32 %v877, %v1714
  %1731 = vst [vmem:[%s5] sm:$0xff] %v1715
  %1732 = vst [vmem:[%s5 + $0x8] sm:$0xff] %v1723
  %s1733 = scalar_lea.vmem %s5, 16
  %1734 = vst [vmem:[%s1733] sm:$0xff] %v1716
  %1735 = vst [vmem:[%s1733 + $0x8] sm:$0xff] %v1724
  %s1736 = scalar_lea.vmem %s5, 32
  %1737 = vst [vmem:[%s1736] sm:$0xff] %v1717
  %1738 = vst [vmem:[%s1736 + $0x8] sm:$0xff] %v1725
  %s1739 = scalar_lea.vmem %s5, 48
  %1740 = vst [vmem:[%s1739] sm:$0xff] %v1718
  %1741 = vst [vmem:[%s1739 + $0x8] sm:$0xff] %v1726
  %s1742 = scalar_lea.vmem %s5, 64
  %1743 = vst [vmem:[%s1742] sm:$0xff] %v1719
  %1744 = vst [vmem:[%s1742 + $0x8] sm:$0xff] %v1727
  %s1745 = scalar_lea.vmem %s5, 80
  %1746 = vst [vmem:[%s1745] sm:$0xff] %v1720
  %1747 = vst [vmem:[%s1745 + $0x8] sm:$0xff] %v1728
  %s1748 = scalar_lea.vmem %s5, 96
  %1749 = vst [vmem:[%s1748] sm:$0xff] %v1721
  %1750 = vst [vmem:[%s1748 + $0x8] sm:$0xff] %v1729
  %s1751 = scalar_lea.vmem %s5, 112
  %1752 = vst [vmem:[%s1751] sm:$0xff] %v1722
  %1753 = vst [vmem:[%s1751 + $0x8] sm:$0xff] %v1730
  // Predicated region
  $region22: #{interactor_forward.1} parent=0 // pred_check
    _
  $region23: #{interactor_forward.1} parent=0 // pred_check_branch
    %1755 = sbr.rel (0) target = $region25
  $region24: #{interactor_forward.1} parent=0 // pred_region
    _
  $region25: #{interactor_forward.1} parent=0 // pred_fallthru
    _
  // Predicated region
  $region26: #{interactor_forward.1} parent=0 // pred_check
    _
  $region27: #{interactor_forward.1} parent=0 // pred_check_branch
    %1757 = sbr.rel (0) target = $region29
  $region28: #{interactor_forward.1} parent=0 // pred_region
    _
  $region29: #{interactor_forward.1} parent=0 // pred_fallthru
    _

</llo_original>
